<compile_context>
chip_gen: v7x
topology: tpu7x:2x2x1
jax: 0.10.0
libtpu: 0.0.40
codegen_flags: <defaults>
</compile_context>

<pallas_src>
import jax
import jax.numpy as jnp
from jax.experimental import pallas as pl
from jax.experimental.pallas import tpu as pltpu


def _make_block_kernel(Nb, H, W, C):
    """Fused whole-block kernel, Nb batch elements per grid step."""
    WC = W * C           # lane-dense row width (matmul N)
    R = Nb * H           # matmul M
    K1 = 3 * WC          # matmul K for one conv (3 dh taps)

    def kernel(x_ref, w_ref, aff_ref, out_ref, col_ref):
        # x_ref  : (Nb, H, WC)    f32   lane-dense input block (unpadded)
        # w_ref  : (9*WC, WC)     bf16  banded weight slabs [band(conv1); band(conv2); band(rconv2)]
        # aff_ref: (8, WC)        f32   rows: s1, t1', s2, t2', s3, t3', 0, 0 (tiled to W*C)
        # out_ref: (Nb, H, WC)    f32
        # col_ref: (Nb, H, 9*WC)  bf16  dh-shifted row staging: slot 0 = x, 1 = x1_1, 2 = x2_0

        zrow = jnp.zeros((Nb, 1, WC), jnp.bfloat16)   # hoisted; reused by every stage()

        def stage(v, slot):
            # v: (Nb, H, WC) bf16.  Writes the 3 dh-shifted copies of v into col_ref lanes
            # [slot*K1, (slot+1)*K1): lane block dh holds v[:, h+dh-1, :] (zero out of range),
            # matching the banded weight slab row order.  All lane offsets are multiples of
            # WC=128 -> aligned, unmasked stores; the H halo is the two zero-row writes.
            base = slot * K1
            col_ref[:, 0:1, base:base + WC] = zrow                       # dh=0, row h=0
            col_ref[:, 1:H, base:base + WC] = v[:, 0:H - 1, :]           # dh=0
            col_ref[:, :, base + WC:base + 2 * WC] = v                   # dh=1
            col_ref[:, 0:H - 1, base + 2 * WC:base + 3 * WC] = v[:, 1:H, :]  # dh=2
            col_ref[:, H - 1:H, base + 2 * WC:base + 3 * WC] = zrow      # dh=2, row h=H-1

        def matmul(lo, hi):
            # Lane range of col_ref and row range of w_ref coincide by construction.
            lhs = col_ref[:, :, lo:hi].reshape(R, hi - lo)               # bf16
            return jnp.dot(lhs, w_ref[lo:hi, :],
                           preferred_element_type=jnp.float32)           # (R, WC) f32

        s1 = aff_ref[0:1, :]; t1 = aff_ref[1:2, :]
        s2 = aff_ref[2:3, :]; t2 = aff_ref[3:4, :]
        s3 = aff_ref[4:5, :]; t3 = aff_ref[5:6, :]

        x0 = x_ref[...]                              # exact f32 residual (matches reference)
        stage(x0.astype(jnp.bfloat16), 0)            # single bf16 cast of the input

        # x = conv1(x0)        -- one (R, 3*WC) @ (3*WC, WC) MXU matmul, f32 accumulation
        y = matmul(0, K1)

        # x1_1 = relu(rbn1(x)),  x2_0 = relu(bn2(x))   (conv1 bias folded into t1', t2')
        x1_1 = jnp.maximum(s1 * y + t1, 0.0)
        x2_0 = jnp.maximum(s2 * y + t2, 0.0)
        stage(x1_1.reshape(Nb, H, WC).astype(jnp.bfloat16), 1)
        stage(x2_0.reshape(Nb, H, WC).astype(jnp.bfloat16), 2)

        # u = conv2(x1_1) + rconv2(x2_0)   -- single K-fused (R, 6*WC) @ (6*WC, WC) matmul
        u = matmul(K1, 3 * K1)

        # x2_1 = relu(rbn2(u))             (conv2 / rconv2 biases folded into t3')
        z = jnp.maximum(s3 * u + t3, 0.0)

        # out = relu(x2_1 + x0)            (stride == 1 -> identity shortcut)
        out_ref[...] = jnp.maximum(z.reshape(Nb, H, WC) + x0,
                                   0.0).astype(out_ref.dtype)

    return kernel


def basic_block_forward(x_nhwc, params, block_batch=None):
    """Fused BasicBlock forward.  x_nhwc: (N, H, W, C) float32.

    block_batch=None -> one grid step with the whole batch (best on single-TC v5e/v6e at toy
    shapes); smaller block_batch -> more steps on the "parallel" batch axis (v7x megacore)."""
    N, H, W, C = x_nhwc.shape
    WC = W * C
    (w1, b1, w2, b2, w3, b3, s1, t1, s2, t2, s3, t3) = params

    Nb = N if block_batch is None else block_batch
    if N % Nb != 0:
        raise ValueError(f"batch {N} not divisible by block_batch {Nb}")

    # Per-channel affine, with conv biases folded in (exact algebra), pre-tiled to width W*C:
    #   relu(s1*(conv1_nb + b1) + t1)                  = relu(s1*conv1_nb + (t1 + s1*b1))
    #   relu(s2*(conv1_nb + b1) + t2)                  = relu(s2*conv1_nb + (t2 + s2*b1))
    #   relu(s3*(rconv2_nb + b3 + conv2_nb + b2) + t3) = relu(s3*(rconv2_nb + conv2_nb)
    #                                                          + (t3 + s3*(b2 + b3)))
    def tile_lane(v):                                  # (1, C) -> (1, W*C), index w*C + c
        return jnp.tile(v.reshape(1, C), (1, W))

    aff = jnp.concatenate(
        [tile_lane(s1), tile_lane(t1 + s1 * b1),
         tile_lane(s2), tile_lane(t2 + s2 * b1),
         tile_lane(s3), tile_lane(t3 + s3 * (b2 + b3)),
         jnp.zeros((2, WC), jnp.float32)], axis=0)     # (8, WC)

    # Banded conv-as-matmul weight slab: (3*W*C, W*C).  Row block dh, entry
    # [(w+dw-1)*C + ci, w*C + co] = w_hwio[dh, dw, ci, co] (zero outside the band), so the dw
    # shift AND the zero padding along W are folded into the matmul.  Each kron term places
    # one (C, C) tap on a (shifted) block diagonal; terms never overlap.
    def band_slab(w_hwio):                             # (3, 3, C, C) HWIO -> (3*WC, WC)
        blocks = []
        for dh in range(3):
            m = jnp.zeros((WC, WC), jnp.float32)
            for dw in range(3):
                m = m + jnp.kron(jnp.eye(W, W, k=1 - dw, dtype=jnp.float32),
                                 w_hwio[dh, dw])
            blocks.append(m)
        return jnp.concatenate(blocks, axis=0)

    wslab = jnp.concatenate([band_slab(w1), band_slab(w2), band_slab(w3)],
                            axis=0).astype(jnp.bfloat16)        # (9*WC, WC) bf16

    x_ld = x_nhwc.reshape(N, H, WC)                    # lane-dense view (free, contiguous)

    kernel = _make_block_kernel(Nb, H, W, C)
    out_ld = pl.pallas_call(
        kernel,
        out_shape=jax.ShapeDtypeStruct((N, H, WC), jnp.float32),
        grid_spec=pltpu.PrefetchScalarGridSpec(
            num_scalar_prefetch=0,
            grid=(N // Nb,),
            in_specs=[
                pl.BlockSpec((Nb, H, WC), lambda b: (b, 0, 0)),
                # Constant index_map -> fetched once, reused across the grid.
                # TODO(synk): at production channel counts single-buffer these constant
                # blocks (pipeline_mode=pl.Buffered(1)) and set vmem_limit_bytes for v7x.
                pl.BlockSpec((9 * WC, WC), lambda b: (0, 0)),
                pl.BlockSpec((8, WC), lambda b: (0, 0)),
            ],
            out_specs=pl.BlockSpec((Nb, H, WC), lambda b: (b, 0, 0)),
            scratch_shapes=[
                pltpu.VMEM((Nb, H, 9 * WC), jnp.bfloat16),   # dh-shifted row staging
            ]),
        compiler_params=pltpu.CompilerParams(
            dimension_semantics=("parallel",)),        # batch steps independent (v7x: 2 TCs)
    )(x_ld, wslab, aff)

    return out_ld.reshape(N, H, W, C)


# ---------------------------------------------------------------------------
# Parameter init + pure-JAX reference (kernel validation only)
# ---------------------------------------------------------------------------

def _fold_bn(gamma, beta, mean, var, eps=1e-5):
    scale = gamma / jnp.sqrt(var + eps)
    bias = beta - mean * scale
    return scale.reshape(1, -1), bias.reshape(1, -1)


def init_params(key, C):
    ks = jax.random.split(key, 16)
    fan_in = 3 * 3 * C

    def conv_w(k):
        return jax.random.normal(k, (3, 3, C, C), jnp.float32) / jnp.sqrt(fan_in)

    def conv_b(k):
        return 0.1 * jax.random.normal(k, (1, C), jnp.float32)

    def bn(k):
        k1, k2, k3, k4 = jax.random.split(k, 4)
        gamma = 1.0 + 0.1 * jax.random.normal(k1, (C,), jnp.float32)
        beta = 0.1 * jax.random.normal(k2, (C,), jnp.float32)
        mean = 0.1 * jax.random.normal(k3, (C,), jnp.float32)
        var = jax.random.uniform(k4, (C,), jnp.float32, 0.5, 1.5)
        return _fold_bn(gamma, beta, mean, var)

    w1, b1 = conv_w(ks[0]), conv_b(ks[1])
    w2, b2 = conv_w(ks[2]), conv_b(ks[3])
    w3, b3 = conv_w(ks[4]), conv_b(ks[5])     # rconv2
    s1, t1 = bn(ks[6])                        # rbn1
    s2, t2 = bn(ks[7])                        # bn2
    s3, t3 = bn(ks[8])                        # rbn2
    return (w1, b1, w2, b2, w3, b3, s1, t1, s2, t2, s3, t3)


def block_reference(x0, params):
    """Pure-JAX reference mirroring the kernel numerics (bf16 conv operands, f32
    accumulation, f32 elementwise/residual) on the live PyTorch dataflow.
    Note: bf16 conv operands will not bit-match a pure-f32 PyTorch BasicBlock."""
    (w1, b1, w2, b2, w3, b3, s1, t1, s2, t2, s3, t3) = params

    def conv(x, w, b):
        y = jax.lax.conv_general_dilated(
            x.astype(jnp.bfloat16), w.astype(jnp.bfloat16),
            window_strides=(1, 1), padding="SAME",
            dimension_numbers=("NHWC", "HWIO", "NHWC"),
            preferred_element_type=jnp.float32)
        return y + b.reshape(1, 1, 1, -1)

    relu = lambda v: jnp.maximum(v, 0.0)
    bc = lambda p: p.reshape(1, 1, 1, -1)

    y = conv(x0, w1, b1)                                   # x = conv1(x0)
    x1_1 = relu(bc(s1) * y + bc(t1))                       # relu(rbn1(x))
    x2 = conv(x1_1, w2, b2)                                # conv2(x1_1)
    x2_0 = relu(bc(s2) * y + bc(t2))                       # relu(bn2(x))
    u = conv(x2_0, w3, b3) + x2                            # rconv2(x2_0) + x2
    z = relu(bc(s3) * u + bc(t3))                          # relu(rbn2(...))
    return relu(z + x0)                                    # relu(x2_1 + x0)


if __name__ == "__main__":
    N, C, Himg, Wimg = 4, 16, 8, 8        # W*C = 128 -> lane-dense layout

    key = jax.random.PRNGKey(0)
    k_x, k_p = jax.random.split(key)

    # PyTorch-style NCHW input, transposed to NHWC for the TPU kernel.
    x_nchw = jax.random.normal(k_x, (N, C, Himg, Wimg), jnp.float32)
    x_nhwc = jnp.transpose(x_nchw, (0, 2, 3, 1))

    params = init_params(k_p, C)
    ref = block_reference(x_nhwc, params)

    # Single grid step (whole batch) -- the v5e/v6e-friendly configuration.
    out = jax.block_until_ready(basic_block_forward(x_nhwc, params))
    if not jnp.allclose(out, ref, atol=1e-2, rtol=1e-2):
        raise AssertionError(
            f"mismatch (single step), max_err={jnp.max(jnp.abs(out - ref))}")

    # Multi-step "parallel" batch grid -- the v7x megacore-sharding path.
    out2 = jax.block_until_ready(basic_block_forward(x_nhwc, params, block_batch=1))
    if not jnp.allclose(out2, ref, atol=1e-2, rtol=1e-2):
        raise AssertionError(
            f"mismatch (block_batch=1), max_err={jnp.max(jnp.abs(out2 - ref))}")

    print("KERNEL_OK")
</pallas_src>

<mosaic_0001>
module attributes {stable_mosaic.version = 11 : i64} {
  func.func @kernel(%arg0: i32, %arg1: memref<4x8x128xf32, #tpu.memory_space<vmem>>, %arg2: memref<1152x128xbf16, #tpu.memory_space<vmem>>, %arg3: memref<8x128xf32, #tpu.memory_space<vmem>>, %arg4: memref<4x8x128xf32, #tpu.memory_space<vmem>>, %arg5: memref<4x8x1152xbf16, #tpu.memory_space<vmem>>) attributes {dimension_semantics = [#tpu.dimension_semantics<parallel>], iteration_bounds = array<i64: 1>, scalar_prefetch = 0 : i64, scratch_operands = 1 : i64, tpu.core_type = #tpu.core_type<tc>, window_params = [{transform_indices = @transform_0, window_bounds = array<i64: 4, 8, 128>}, {pipeline_mode = #tpu.pipeline_mode<synchronous>, transform_indices = @transform_1, window_bounds = array<i64: 1152, 128>}, {pipeline_mode = #tpu.pipeline_mode<synchronous>, transform_indices = @transform_2, window_bounds = array<i64: 8, 128>}, {transform_indices = @transform_3, window_bounds = array<i64: 4, 8, 128>}]} {
    %cst = arith.constant 0.000000e+00 : bf16
    %0 = vector.broadcast %cst : bf16 to vector<4x1x128xbf16>
    %c0 = arith.constant 0 : index
    %c0_0 = arith.constant 0 : index
    %1 = vector.load %arg3[%c0, %c0_0] : memref<8x128xf32, #tpu.memory_space<vmem>>, vector<1x128xf32>
    %c1 = arith.constant 1 : index
    %c0_1 = arith.constant 0 : index
    %2 = vector.load %arg3[%c1, %c0_1] : memref<8x128xf32, #tpu.memory_space<vmem>>, vector<1x128xf32>
    %c2 = arith.constant 2 : index
    %c0_2 = arith.constant 0 : index
    %3 = vector.load %arg3[%c2, %c0_2] : memref<8x128xf32, #tpu.memory_space<vmem>>, vector<1x128xf32>
    %c3 = arith.constant 3 : index
    %c0_3 = arith.constant 0 : index
    %4 = vector.load %arg3[%c3, %c0_3] : memref<8x128xf32, #tpu.memory_space<vmem>>, vector<1x128xf32>
    %c4 = arith.constant 4 : index
    %c0_4 = arith.constant 0 : index
    %5 = vector.load %arg3[%c4, %c0_4] : memref<8x128xf32, #tpu.memory_space<vmem>>, vector<1x128xf32>
    %c5 = arith.constant 5 : index
    %c0_5 = arith.constant 0 : index
    %6 = vector.load %arg3[%c5, %c0_5] : memref<8x128xf32, #tpu.memory_space<vmem>>, vector<1x128xf32>
    %c0_6 = arith.constant 0 : index
    %c0_7 = arith.constant 0 : index
    %c0_8 = arith.constant 0 : index
    %7 = vector.load %arg1[%c0_6, %c0_7, %c0_8] : memref<4x8x128xf32, #tpu.memory_space<vmem>>, vector<4x8x128xf32>
    %8 = arith.truncf %7 : vector<4x8x128xf32> to vector<4x8x128xbf16>
    %c0_9 = arith.constant 0 : index
    %c0_10 = arith.constant 0 : index
    %c0_11 = arith.constant 0 : index
    %9 = vector.load %arg5[%c0_9, %c0_10, %c0_11] : memref<4x8x1152xbf16, #tpu.memory_space<vmem>>, vector<4x1x128xbf16>
    tpu.vector_store %arg5[%c0_9, %c0_10, %c0_11], %0 {strides = array<i32>} : memref<4x8x1152xbf16, #tpu.memory_space<vmem>>, vector<4x1x128xbf16>,
    %10 = vector.extract_strided_slice %8 {offsets = [0, 0, 0], sizes = [4, 7, 128], strides = [1, 1, 1]} : vector<4x8x128xbf16> to vector<4x7x128xbf16>
    %c0_12 = arith.constant 0 : index
    %c1_13 = arith.constant 1 : index
    %c0_14 = arith.constant 0 : index
    %11 = vector.load %arg5[%c0_12, %c1_13, %c0_14] : memref<4x8x1152xbf16, #tpu.memory_space<vmem>>, vector<4x7x128xbf16>
    tpu.vector_store %arg5[%c0_12, %c1_13, %c0_14], %10 {strides = array<i32>} : memref<4x8x1152xbf16, #tpu.memory_space<vmem>>, vector<4x7x128xbf16>,
    %c0_15 = arith.constant 0 : index
    %c0_16 = arith.constant 0 : index
    %c128 = arith.constant 128 : index
    %12 = vector.load %arg5[%c0_15, %c0_16, %c128] : memref<4x8x1152xbf16, #tpu.memory_space<vmem>>, vector<4x8x128xbf16>
    tpu.vector_store %arg5[%c0_15, %c0_16, %c128], %8 {strides = array<i32>} : memref<4x8x1152xbf16, #tpu.memory_space<vmem>>, vector<4x8x128xbf16>,
    %13 = vector.extract_strided_slice %8 {offsets = [0, 1, 0], sizes = [4, 7, 128], strides = [1, 1, 1]} : vector<4x8x128xbf16> to vector<4x7x128xbf16>
    %c0_17 = arith.constant 0 : index
    %c0_18 = arith.constant 0 : index
    %c256 = arith.constant 256 : index
    %14 = vector.load %arg5[%c0_17, %c0_18, %c256] : memref<4x8x1152xbf16, #tpu.memory_space<vmem>>, vector<4x7x128xbf16>
    tpu.vector_store %arg5[%c0_17, %c0_18, %c256], %13 {strides = array<i32>} : memref<4x8x1152xbf16, #tpu.memory_space<vmem>>, vector<4x7x128xbf16>,
    %c0_19 = arith.constant 0 : index
    %c7 = arith.constant 7 : index
    %c256_20 = arith.constant 256 : index
    %15 = vector.load %arg5[%c0_19, %c7, %c256_20] : memref<4x8x1152xbf16, #tpu.memory_space<vmem>>, vector<4x1x128xbf16>
    tpu.vector_store %arg5[%c0_19, %c7, %c256_20], %0 {strides = array<i32>} : memref<4x8x1152xbf16, #tpu.memory_space<vmem>>, vector<4x1x128xbf16>,
    %c0_21 = arith.constant 0 : index
    %c0_22 = arith.constant 0 : index
    %c0_23 = arith.constant 0 : index
    %16 = vector.load %arg5[%c0_21, %c0_22, %c0_23] : memref<4x8x1152xbf16, #tpu.memory_space<vmem>>, vector<4x8x384xbf16>
    %17 = vector.shape_cast %16 : vector<4x8x384xbf16> to vector<32x384xbf16>
    %c0_24 = arith.constant 0 : index
    %c0_25 = arith.constant 0 : index
    %18 = vector.load %arg2[%c0_24, %c0_25] : memref<1152x128xbf16, #tpu.memory_space<vmem>>, vector<384x128xbf16>
    %cst_26 = arith.constant dense<0.000000e+00> : vector<32x128xf32>
    %19 = tpu.matmul %17, %18, %cst_26 {dimension_numbers = #tpu.dot_dimension_numbers<[1], [0], [0], [1], [0, 0, 1, 1], [], []>} : vector<32x384xbf16>, vector<384x128xbf16>, vector<32x128xf32> -> vector<32x128xf32>
    %20 = vector.broadcast %1 : vector<1x128xf32> to vector<32x128xf32>
    %21 = arith.mulf %20, %19 : vector<32x128xf32>
    %22 = vector.broadcast %2 : vector<1x128xf32> to vector<32x128xf32>
    %23 = arith.addf %21, %22 : vector<32x128xf32>
    %cst_27 = arith.constant 0.000000e+00 : f32
    %24 = vector.broadcast %cst_27 : f32 to vector<32x128xf32>
    %25 = arith.maximumf %23, %24 : vector<32x128xf32>
    %26 = vector.broadcast %3 : vector<1x128xf32> to vector<32x128xf32>
    %27 = arith.mulf %26, %19 : vector<32x128xf32>
    %28 = vector.broadcast %4 : vector<1x128xf32> to vector<32x128xf32>
    %29 = arith.addf %27, %28 : vector<32x128xf32>
    %cst_28 = arith.constant 0.000000e+00 : f32
    %30 = vector.broadcast %cst_28 : f32 to vector<32x128xf32>
    %31 = arith.maximumf %29, %30 : vector<32x128xf32>
    %32 = vector.shape_cast %25 : vector<32x128xf32> to vector<4x8x128xf32>
    %33 = arith.truncf %32 : vector<4x8x128xf32> to vector<4x8x128xbf16>
    %c0_29 = arith.constant 0 : index
    %c0_30 = arith.constant 0 : index
    %c384 = arith.constant 384 : index
    %34 = vector.load %arg5[%c0_29, %c0_30, %c384] : memref<4x8x1152xbf16, #tpu.memory_space<vmem>>, vector<4x1x128xbf16>
    tpu.vector_store %arg5[%c0_29, %c0_30, %c384], %0 {strides = array<i32>} : memref<4x8x1152xbf16, #tpu.memory_space<vmem>>, vector<4x1x128xbf16>,
    %35 = vector.extract_strided_slice %33 {offsets = [0, 0, 0], sizes = [4, 7, 128], strides = [1, 1, 1]} : vector<4x8x128xbf16> to vector<4x7x128xbf16>
    %c0_31 = arith.constant 0 : index
    %c1_32 = arith.constant 1 : index
    %c384_33 = arith.constant 384 : index
    %36 = vector.load %arg5[%c0_31, %c1_32, %c384_33] : memref<4x8x1152xbf16, #tpu.memory_space<vmem>>, vector<4x7x128xbf16>
    tpu.vector_store %arg5[%c0_31, %c1_32, %c384_33], %35 {strides = array<i32>} : memref<4x8x1152xbf16, #tpu.memory_space<vmem>>, vector<4x7x128xbf16>,
    %c0_34 = arith.constant 0 : index
    %c0_35 = arith.constant 0 : index
    %c512 = arith.constant 512 : index
    %37 = vector.load %arg5[%c0_34, %c0_35, %c512] : memref<4x8x1152xbf16, #tpu.memory_space<vmem>>, vector<4x8x128xbf16>
    tpu.vector_store %arg5[%c0_34, %c0_35, %c512], %33 {strides = array<i32>} : memref<4x8x1152xbf16, #tpu.memory_space<vmem>>, vector<4x8x128xbf16>,
    %38 = vector.extract_strided_slice %33 {offsets = [0, 1, 0], sizes = [4, 7, 128], strides = [1, 1, 1]} : vector<4x8x128xbf16> to vector<4x7x128xbf16>
    %c0_36 = arith.constant 0 : index
    %c0_37 = arith.constant 0 : index
    %c640 = arith.constant 640 : index
    %39 = vector.load %arg5[%c0_36, %c0_37, %c640] : memref<4x8x1152xbf16, #tpu.memory_space<vmem>>, vector<4x7x128xbf16>
    tpu.vector_store %arg5[%c0_36, %c0_37, %c640], %38 {strides = array<i32>} : memref<4x8x1152xbf16, #tpu.memory_space<vmem>>, vector<4x7x128xbf16>,
    %c0_38 = arith.constant 0 : index
    %c7_39 = arith.constant 7 : index
    %c640_40 = arith.constant 640 : index
    %40 = vector.load %arg5[%c0_38, %c7_39, %c640_40] : memref<4x8x1152xbf16, #tpu.memory_space<vmem>>, vector<4x1x128xbf16>
    tpu.vector_store %arg5[%c0_38, %c7_39, %c640_40], %0 {strides = array<i32>} : memref<4x8x1152xbf16, #tpu.memory_space<vmem>>, vector<4x1x128xbf16>,
    %41 = vector.shape_cast %31 : vector<32x128xf32> to vector<4x8x128xf32>
    %42 = arith.truncf %41 : vector<4x8x128xf32> to vector<4x8x128xbf16>
    %c0_41 = arith.constant 0 : index
    %c0_42 = arith.constant 0 : index
    %c768 = arith.constant 768 : index
    %43 = vector.load %arg5[%c0_41, %c0_42, %c768] : memref<4x8x1152xbf16, #tpu.memory_space<vmem>>, vector<4x1x128xbf16>
    tpu.vector_store %arg5[%c0_41, %c0_42, %c768], %0 {strides = array<i32>} : memref<4x8x1152xbf16, #tpu.memory_space<vmem>>, vector<4x1x128xbf16>,
    %44 = vector.extract_strided_slice %42 {offsets = [0, 0, 0], sizes = [4, 7, 128], strides = [1, 1, 1]} : vector<4x8x128xbf16> to vector<4x7x128xbf16>
    %c0_43 = arith.constant 0 : index
    %c1_44 = arith.constant 1 : index
    %c768_45 = arith.constant 768 : index
    %45 = vector.load %arg5[%c0_43, %c1_44, %c768_45] : memref<4x8x1152xbf16, #tpu.memory_space<vmem>>, vector<4x7x128xbf16>
    tpu.vector_store %arg5[%c0_43, %c1_44, %c768_45], %44 {strides = array<i32>} : memref<4x8x1152xbf16, #tpu.memory_space<vmem>>, vector<4x7x128xbf16>,
    %c0_46 = arith.constant 0 : index
    %c0_47 = arith.constant 0 : index
    %c896 = arith.constant 896 : index
    %46 = vector.load %arg5[%c0_46, %c0_47, %c896] : memref<4x8x1152xbf16, #tpu.memory_space<vmem>>, vector<4x8x128xbf16>
    tpu.vector_store %arg5[%c0_46, %c0_47, %c896], %42 {strides = array<i32>} : memref<4x8x1152xbf16, #tpu.memory_space<vmem>>, vector<4x8x128xbf16>,
    %47 = vector.extract_strided_slice %42 {offsets = [0, 1, 0], sizes = [4, 7, 128], strides = [1, 1, 1]} : vector<4x8x128xbf16> to vector<4x7x128xbf16>
    %c0_48 = arith.constant 0 : index
    %c0_49 = arith.constant 0 : index
    %c1024 = arith.constant 1024 : index
    %48 = vector.load %arg5[%c0_48, %c0_49, %c1024] : memref<4x8x1152xbf16, #tpu.memory_space<vmem>>, vector<4x7x128xbf16>
    tpu.vector_store %arg5[%c0_48, %c0_49, %c1024], %47 {strides = array<i32>} : memref<4x8x1152xbf16, #tpu.memory_space<vmem>>, vector<4x7x128xbf16>,
    %c0_50 = arith.constant 0 : index
    %c7_51 = arith.constant 7 : index
    %c1024_52 = arith.constant 1024 : index
    %49 = vector.load %arg5[%c0_50, %c7_51, %c1024_52] : memref<4x8x1152xbf16, #tpu.memory_space<vmem>>, vector<4x1x128xbf16>
    tpu.vector_store %arg5[%c0_50, %c7_51, %c1024_52], %0 {strides = array<i32>} : memref<4x8x1152xbf16, #tpu.memory_space<vmem>>, vector<4x1x128xbf16>,
    %c0_53 = arith.constant 0 : index
    %c0_54 = arith.constant 0 : index
    %c384_55 = arith.constant 384 : index
    %50 = vector.load %arg5[%c0_53, %c0_54, %c384_55] : memref<4x8x1152xbf16, #tpu.memory_space<vmem>>, vector<4x8x768xbf16>
    %51 = vector.shape_cast %50 : vector<4x8x768xbf16> to vector<32x768xbf16>
    %c384_56 = arith.constant 384 : index
    %c0_57 = arith.constant 0 : index
    %52 = vector.load %arg2[%c384_56, %c0_57] : memref<1152x128xbf16, #tpu.memory_space<vmem>>, vector<768x128xbf16>
    %cst_58 = arith.constant dense<0.000000e+00> : vector<32x128xf32>
    %53 = tpu.matmul %51, %52, %cst_58 {dimension_numbers = #tpu.dot_dimension_numbers<[1], [0], [0], [1], [0, 0, 1, 1], [], []>} : vector<32x768xbf16>, vector<768x128xbf16>, vector<32x128xf32> -> vector<32x128xf32>
    %54 = vector.broadcast %5 : vector<1x128xf32> to vector<32x128xf32>
    %55 = arith.mulf %54, %53 : vector<32x128xf32>
    %56 = vector.broadcast %6 : vector<1x128xf32> to vector<32x128xf32>
    %57 = arith.addf %55, %56 : vector<32x128xf32>
    %cst_59 = arith.constant 0.000000e+00 : f32
    %58 = vector.broadcast %cst_59 : f32 to vector<32x128xf32>
    %59 = arith.maximumf %57, %58 : vector<32x128xf32>
    %60 = vector.shape_cast %59 : vector<32x128xf32> to vector<4x8x128xf32>
    %61 = arith.addf %60, %7 : vector<4x8x128xf32>
    %cst_60 = arith.constant 0.000000e+00 : f32
    %62 = vector.broadcast %cst_60 : f32 to vector<4x8x128xf32>
    %63 = arith.maximumf %61, %62 : vector<4x8x128xf32>
    %c0_61 = arith.constant 0 : index
    %c0_62 = arith.constant 0 : index
    %c0_63 = arith.constant 0 : index
    %64 = vector.load %arg4[%c0_61, %c0_62, %c0_63] : memref<4x8x128xf32, #tpu.memory_space<vmem>>, vector<4x8x128xf32>
    tpu.vector_store %arg4[%c0_61, %c0_62, %c0_63], %63 {strides = array<i32>} : memref<4x8x128xf32, #tpu.memory_space<vmem>>, vector<4x8x128xf32>,
    return
  }
  func.func @transform_0(%arg0: i32) -> (i32, i32, i32) {
    %c0_i32 = arith.constant 0 : i32
    %c0_i32_0 = arith.constant 0 : i32
    %c0_i32_1 = arith.constant 0 : i32
    return %arg0, %c0_i32, %c0_i32_0 : i32, i32, i32
  }
  func.func @transform_1(%arg0: i32) -> (i32, i32) {
    %c0_i32 = arith.constant 0 : i32
    %c0_i32_0 = arith.constant 0 : i32
    %c0_i32_1 = arith.constant 0 : i32
    return %c0_i32, %c0_i32_0 : i32, i32
  }
  func.func @transform_2(%arg0: i32) -> (i32, i32) {
    %c0_i32 = arith.constant 0 : i32
    %c0_i32_0 = arith.constant 0 : i32
    %c0_i32_1 = arith.constant 0 : i32
    return %c0_i32, %c0_i32_0 : i32, i32
  }
  func.func @transform_3(%arg0: i32) -> (i32, i32, i32) {
    %c0_i32 = arith.constant 0 : i32
    %c0_i32_0 = arith.constant 0 : i32
    %c0_i32_1 = arith.constant 0 : i32
    return %arg0, %c0_i32, %c0_i32_0 : i32, i32, i32
  }
}

</mosaic_0001>

<llo_original>
// kernel: tpu_custom_call.1
$region0: #{tpu_custom_call.1}
  #allocation0 [shape = 'u32[]', space=smem, size = 0x4, offset = 0x4, fixed_abs, tag = 'smem constant byte address 0x4 - core index']
  #allocation1 [shape = 'u32[144,128]{1,0:T(1,128)}', space=vmem, size = 0x12000, scoped, tag = 'internal scratch']
  #allocation2 [shape = 'bf16[4,8,1152]{2,1,0:T(8,128)(2,1)}', space=vmem, size = 0x12000, scoped, tag = 'scratch operand']
  %s0 = inlined_call_operand.hbm [shape: f32[4,8,128], index: 0, kind: input, shape index: {}]
  %s1 = inlined_call_operand.hbm [shape: bf16[1152,128], index: 1, kind: input, shape index: {}]
  %s2 = inlined_call_operand.hbm [shape: f32[8,128], index: 2, kind: input, shape index: {}]
  %s3 = inlined_call_operand.hbm [shape: f32[4,8,128], index: 3, kind: output, shape index: {}]
  %s4 = sld [smem:[#allocation0]]
  $region34: #{tpu_custom_call.1} parent=0
    _
  %s6 = ssub.s32 1, %s4
  %s7 = scalar_select 0, %s6, %s4
  $region1: #{tpu_custom_call.1} parent=0
    #allocation3 [shape = 'u8[16384]{0}', space=vmem, size = 0x4000, scoped, tag = 'input window, operand 0, single buffered']
    #allocation4 [shape = 's32[1]{0}', space=sflag, size = 0x4, scoped, tag = 'scoped memory for tpu_custom_call.1']
    #allocation5 [shape = 's32[1]{0}', space=sflag, size = 0x4, scoped, tag = 'scoped memory for tpu_custom_call.1']
    #allocation6 [shape = 'u8[294912]{0}', space=vmem, size = 0x48000, scoped, tag = 'input window, operand 1, single buffered']
    #allocation7 [shape = 's32[1]{0}', space=sflag, size = 0x4, scoped, tag = 'scoped memory for tpu_custom_call.1']
    #allocation8 [shape = 'u8[4096]{0}', space=vmem, size = 0x1000, scoped, tag = 'input window, operand 2, single buffered']
    #allocation9 [shape = 'u8[16384]{0}', space=vmem, size = 0x4000, scoped, tag = 'output window, operand 0, single buffered']
    %8 = vsyncpa [#allocation4], 0
    %9 = vsyncpa [#allocation7], 0
    %10 = vsyncpa [#allocation5], 0
    // Predicated region
    $region2: #{tpu_custom_call.1} parent=1 // pred_check
      _
    $region3: #{tpu_custom_call.1} parent=1 // pred_check_branch
      %12 = sbr.rel (0) target = $region5
    $region4: #{tpu_custom_call.1} parent=1 // pred_region
      %s14 = ssub.s32 512, 512
      %15 = vsyncadd [#allocation4], %s14
      %s16 = sshll.u32 [#allocation3], 4
      %s17 = int_to_ptr.vmem [resolvable:$true] %s16
      %22 = dma.hbm_to_vmem [thread:$0]  %s0, 512, %s17, [#allocation4], 128, 128, 8
    $region5: #{tpu_custom_call.1} parent=1 // pred_fallthru
      _
    // Predicated region
    $region6: #{tpu_custom_call.1} parent=1 // pred_check
      _
    $region7: #{tpu_custom_call.1} parent=1 // pred_check_branch
      %24 = sbr.rel (0) target = $region9
    $region8: #{tpu_custom_call.1} parent=1 // pred_region
      %s26 = ssub.s32 9216, 9216
      %27 = vsyncadd [#allocation7], %s26
      %s28 = sshll.u32 [#allocation6], 4
      %s29 = int_to_ptr.vmem [resolvable:$true] %s28
      %34 = dma.hbm_to_vmem [thread:$0]  %s1, 9216, %s29, [#allocation7], 64, 64, 4
    $region9: #{tpu_custom_call.1} parent=1 // pred_fallthru
      _
    // Predicated region
    $region10: #{tpu_custom_call.1} parent=1 // pred_check
      _
    $region11: #{tpu_custom_call.1} parent=1 // pred_check_branch
      %36 = sbr.rel (0) target = $region13
    $region12: #{tpu_custom_call.1} parent=1 // pred_region
      %s38 = ssub.s32 128, 128
      %39 = vsyncadd [#allocation7], %s38
      %s41 = sshll.u32 [#allocation8], 4
      %s42 = int_to_ptr.vmem [resolvable:$true] %s41
      %44 = dma.hbm_to_vmem [thread:$0]  %s2, 128, %s42, [#allocation7]
    $region13: #{tpu_custom_call.1} parent=1 // pred_fallthru
      _
    // Predicated region
    $region14: #{tpu_custom_call.1} parent=1 // pred_check
      _
    $region15: #{tpu_custom_call.1} parent=1 // pred_check_branch
      %46 = sbr.rel (0) target = $region17
    $region16: #{tpu_custom_call.1} parent=1 // pred_region
      %47 = dma.done [#allocation4], 512
    $region17: #{tpu_custom_call.1} parent=1 // pred_fallthru
      _
    // Predicated region
    $region18: #{tpu_custom_call.1} parent=1 // pred_check
      _
    $region19: #{tpu_custom_call.1} parent=1 // pred_check_branch
      %49 = sbr.rel (0) target = $region21
    $region20: #{tpu_custom_call.1} parent=1 // pred_region
      %50 = dma.done [#allocation7], 9216
    $region21: #{tpu_custom_call.1} parent=1 // pred_fallthru
      _
    // Predicated region
    $region22: #{tpu_custom_call.1} parent=1 // pred_check
      _
    $region23: #{tpu_custom_call.1} parent=1 // pred_check_branch
      %52 = sbr.rel (0) target = $region25
    $region24: #{tpu_custom_call.1} parent=1 // pred_region
      %53 = dma.done [#allocation7], 128
    $region25: #{tpu_custom_call.1} parent=1 // pred_fallthru
      _
    %v55 = vld [vmem:[#allocation8] sm:$0x1]
    %v56 = vld [vmem:[#allocation8 + $0x1] sm:$0x1]
    %v57 = vld [vmem:[#allocation8 + $0x2] sm:$0x1]
    %v58 = vld [vmem:[#allocation8 + $0x3] sm:$0x1]
    %v59 = vld [vmem:[#allocation8 + $0x4] sm:$0x1]
    %v60 = vld [vmem:[#allocation8 + $0x5] sm:$0x1]
    %v61 = vld [vmem:[#allocation3] sm:$0xff]
    %v62 = vld [vmem:[#allocation3 + $0x8] sm:$0xff]
    %v63 = vld [vmem:[#allocation3 + $0x10] sm:$0xff]
    %v64 = vld [vmem:[#allocation3 + $0x18] sm:$0xff]
    %v65 = vpack.c.bf16 %v61, %v61
    %v66 = vpack.c.bf16 %v62, %v62
    %v67 = vpack.c.bf16 %v63, %v63
    %v68 = vpack.c.bf16 %v64, %v64
    %vm69 = vcmask 1040384
    %vm70 = vsmask.f32 256
    %vm71 = vmand %vm69, %vm70
    %v72 = vld [vmem:[#allocation2] sm:$0x1]
    %v73 = vsel %vm71, 0, %v72
    %74 = vst [vmem:[#allocation2] sm:$0x1] %v73
    %v75 = vld [vmem:[#allocation2 + $0x24] sm:$0x1]
    %v76 = vsel %vm71, 0, %v75
    %77 = vst [vmem:[#allocation2 + $0x24] sm:$0x1] %v76
    %v78 = vld [vmem:[#allocation2 + $0x48] sm:$0x1]
    %v79 = vsel %vm71, 0, %v78
    %80 = vst [vmem:[#allocation2 + $0x48] sm:$0x1] %v79
    %v81 = vld [vmem:[#allocation2 + $0x6c] sm:$0x1]
    %v82 = vsel %vm71, 0, %v81
    %83 = vst [vmem:[#allocation2 + $0x6c] sm:$0x1] %v82
    %v88 = vunpack.c.l.b16 %v65
    %v89 = vunpack.c.l.b16 %v66
    %v90 = vunpack.c.l.b16 %v67
    %v91 = vunpack.c.l.b16 %v68
    %v92 = vpack.c.b16 %v88, %v88
    %v93 = vpack.c.b16 %v89, %v89
    %v94 = vpack.c.b16 %v90, %v90
    %v95 = vpack.c.b16 %v91, %v91
    %v97 = vshrl.u32 %v92, 16
    %v99 = vrot.slane %v97, 7
    %v100 = vshll.u32 %v92, 16
    %v102 = vor.u32 %v99, %v100
    %v104 = vshrl.u32 %v93, 16
    %v106 = vrot.slane %v104, 7
    %v107 = vshll.u32 %v93, 16
    %v109 = vor.u32 %v106, %v107
    %v111 = vshrl.u32 %v94, 16
    %v113 = vrot.slane %v111, 7
    %v114 = vshll.u32 %v94, 16
    %v116 = vor.u32 %v113, %v114
    %v118 = vshrl.u32 %v95, 16
    %v120 = vrot.slane %v118, 7
    %v121 = vshll.u32 %v95, 16
    %v123 = vor.u32 %v120, %v121
    %vm128 = vcmask 1043456
    %vm129 = vsmask.f32 7938
    %vm130 = vmand %vm128, %vm129
    %v131 = vld [vmem:[#allocation2] sm:$0xf]
    %v132 = vsel %vm130, %v102, %v131
    %133 = vst [vmem:[#allocation2] sm:$0xf] %v132
    %v134 = vld [vmem:[#allocation2 + $0x24] sm:$0xf]
    %v135 = vsel %vm130, %v109, %v134
    %136 = vst [vmem:[#allocation2 + $0x24] sm:$0xf] %v135
    %v137 = vld [vmem:[#allocation2 + $0x48] sm:$0xf]
    %v138 = vsel %vm130, %v116, %v137
    %139 = vst [vmem:[#allocation2 + $0x48] sm:$0xf] %v138
    %v140 = vld [vmem:[#allocation2 + $0x6c] sm:$0xf]
    %v141 = vsel %vm130, %v123, %v140
    %142 = vst [vmem:[#allocation2 + $0x6c] sm:$0xf] %v141
    %143 = vst [vmem:[#allocation2 + $0x4] sm:$0xf] %v65
    %144 = vst [vmem:[#allocation2 + $0x28] sm:$0xf] %v66
    %145 = vst [vmem:[#allocation2 + $0x4c] sm:$0xf] %v67
    %146 = vst [vmem:[#allocation2 + $0x70] sm:$0xf] %v68
    %v147 = vrot.slane %v97, 4
    %v148 = vrot.slane %v100, 5
    %v149 = vor.u32 %v147, %v148
    %v150 = vrot.slane %v149, 4
    %v151 = vrot.slane %v104, 4
    %v152 = vrot.slane %v107, 5
    %v153 = vor.u32 %v151, %v152
    %v154 = vrot.slane %v153, 4
    %v155 = vrot.slane %v111, 4
    %v156 = vrot.slane %v114, 5
    %v157 = vor.u32 %v155, %v156
    %v158 = vrot.slane %v157, 4
    %v159 = vrot.slane %v118, 4
    %v160 = vrot.slane %v121, 5
    %v161 = vor.u32 %v159, %v160
    %v162 = vrot.slane %v161, 4
    %vm167 = vsmask.f32 3328
    %vm168 = vmand %vm128, %vm167
    %v169 = vld [vmem:[#allocation2 + $0x8] sm:$0xf]
    %v170 = vsel %vm168, %v150, %v169
    %171 = vst [vmem:[#allocation2 + $0x8] sm:$0xf] %v170
    %v172 = vld [vmem:[#allocation2 + $0x2c] sm:$0xf]
    %v173 = vsel %vm168, %v154, %v172
    %174 = vst [vmem:[#allocation2 + $0x2c] sm:$0xf] %v173
    %v175 = vld [vmem:[#allocation2 + $0x50] sm:$0xf]
    %v176 = vsel %vm168, %v158, %v175
    %177 = vst [vmem:[#allocation2 + $0x50] sm:$0xf] %v176
    %v178 = vld [vmem:[#allocation2 + $0x74] sm:$0xf]
    %v179 = vsel %vm168, %v162, %v178
    %180 = vst [vmem:[#allocation2 + $0x74] sm:$0xf] %v179
    %vm181 = vcmask 1043459
    %vm182 = vsmask.f32 7950
    %vm183 = vmand %vm181, %vm182
    %v184 = vld [vmem:[#allocation2 + $0x8] sm:$0x8]
    %v185 = vsel %vm183, 0, %v184
    %186 = vst [vmem:[#allocation2 + $0x8] sm:$0x8] %v185
    %v187 = vld [vmem:[#allocation2 + $0x2c] sm:$0x8]
    %v188 = vsel %vm183, 0, %v187
    %189 = vst [vmem:[#allocation2 + $0x2c] sm:$0x8] %v188
    %v190 = vld [vmem:[#allocation2 + $0x50] sm:$0x8]
    %v191 = vsel %vm183, 0, %v190
    %192 = vst [vmem:[#allocation2 + $0x50] sm:$0x8] %v191
    %v193 = vld [vmem:[#allocation2 + $0x74] sm:$0x8]
    %v194 = vsel %vm183, 0, %v193
    %195 = vst [vmem:[#allocation2 + $0x74] sm:$0x8] %v194
    %v196 = vld [vmem:[#allocation2] sm:$0xff]
    %v197 = vld [vmem:[#allocation2 + $0x8] sm:$0xf]
    %v198 = vld [vmem:[#allocation2 + $0x24] sm:$0xff]
    %v199 = vld [vmem:[#allocation2 + $0x2c] sm:$0xf]
    %v200 = vld [vmem:[#allocation2 + $0x48] sm:$0xff]
    %v201 = vld [vmem:[#allocation2 + $0x50] sm:$0xf]
    %v202 = vld [vmem:[#allocation2 + $0x6c] sm:$0xff]
    %v203 = vld [vmem:[#allocation2 + $0x74] sm:$0xf]
    %v204 = vld [vmem:[#allocation6] sm:$0xf]
    %v205 = vld [vmem:[#allocation6 + $0x4] sm:$0xf]
    %v206 = vld [vmem:[#allocation6 + $0x8] sm:$0xf]
    %v207 = vld [vmem:[#allocation6 + $0xc] sm:$0xf]
    %v208 = vld [vmem:[#allocation6 + $0x10] sm:$0xf]
    %v209 = vld [vmem:[#allocation6 + $0x14] sm:$0xf]
    %v210 = vld [vmem:[#allocation6 + $0x18] sm:$0xf]
    %v211 = vld [vmem:[#allocation6 + $0x1c] sm:$0xf]
    %v212 = vld [vmem:[#allocation6 + $0x20] sm:$0xf]
    %v213 = vld [vmem:[#allocation6 + $0x24] sm:$0xf]
    %v214 = vld [vmem:[#allocation6 + $0x28] sm:$0xf]
    %v215 = vld [vmem:[#allocation6 + $0x2c] sm:$0xf]
    %v216 = vld [vmem:[#allocation6 + $0x30] sm:$0xf]
    %v217 = vld [vmem:[#allocation6 + $0x34] sm:$0xf]
    %v218 = vld [vmem:[#allocation6 + $0x38] sm:$0xf]
    %v219 = vld [vmem:[#allocation6 + $0x3c] sm:$0xf]
    %v220 = vld [vmem:[#allocation6 + $0x40] sm:$0xf]
    %v221 = vld [vmem:[#allocation6 + $0x44] sm:$0xf]
    %v222 = vld [vmem:[#allocation6 + $0x48] sm:$0xf]
    %v223 = vld [vmem:[#allocation6 + $0x4c] sm:$0xf]
    %v224 = vld [vmem:[#allocation6 + $0x50] sm:$0xf]
    %v225 = vld [vmem:[#allocation6 + $0x54] sm:$0xf]
    %v226 = vld [vmem:[#allocation6 + $0x58] sm:$0xf]
    %v227 = vld [vmem:[#allocation6 + $0x5c] sm:$0xf]
    %v228 = vld [vmem:[#allocation6 + $0x60] sm:$0xf]
    %v229 = vld [vmem:[#allocation6 + $0x64] sm:$0xf]
    %v230 = vld [vmem:[#allocation6 + $0x68] sm:$0xf]
    %v231 = vld [vmem:[#allocation6 + $0x6c] sm:$0xf]
    %v232 = vld [vmem:[#allocation6 + $0x70] sm:$0xf]
    %v233 = vld [vmem:[#allocation6 + $0x74] sm:$0xf]
    %v234 = vld [vmem:[#allocation6 + $0x78] sm:$0xf]
    %v235 = vld [vmem:[#allocation6 + $0x7c] sm:$0xf]
    %v236 = vld [vmem:[#allocation6 + $0x80] sm:$0xf]
    %v237 = vld [vmem:[#allocation6 + $0x84] sm:$0xf]
    %v238 = vld [vmem:[#allocation6 + $0x88] sm:$0xf]
    %v239 = vld [vmem:[#allocation6 + $0x8c] sm:$0xf]
    %v240 = vld [vmem:[#allocation6 + $0x90] sm:$0xf]
    %v241 = vld [vmem:[#allocation6 + $0x94] sm:$0xf]
    %v242 = vld [vmem:[#allocation6 + $0x98] sm:$0xf]
    %v243 = vld [vmem:[#allocation6 + $0x9c] sm:$0xf]
    %v244 = vld [vmem:[#allocation6 + $0xa0] sm:$0xf]
    %v245 = vld [vmem:[#allocation6 + $0xa4] sm:$0xf]
    %v246 = vld [vmem:[#allocation6 + $0xa8] sm:$0xf]
    %v247 = vld [vmem:[#allocation6 + $0xac] sm:$0xf]
    %v248 = vld [vmem:[#allocation6 + $0xb0] sm:$0xf]
    %v249 = vld [vmem:[#allocation6 + $0xb4] sm:$0xf]
    %v250 = vld [vmem:[#allocation6 + $0xb8] sm:$0xf]
    %v251 = vld [vmem:[#allocation6 + $0xbc] sm:$0xf]
    %v260 = vunpack.c.l.b16 %v196
    %v261 = vunpack.c.h.b16 %v196
    %v262 = vunpack.c.l.b16 %v197
    %v263 = vunpack.c.l.b16 %v198
    %v264 = vunpack.c.h.b16 %v198
    %v265 = vunpack.c.l.b16 %v199
    %v266 = vunpack.c.l.b16 %v200
    %v267 = vunpack.c.h.b16 %v200
    %v268 = vunpack.c.l.b16 %v201
    %v269 = vunpack.c.l.b16 %v202
    %v270 = vunpack.c.h.b16 %v202
    %v271 = vunpack.c.l.b16 %v203
    %v272 = vpack.c.b16 %v263, %v260
    %v273 = vpack.c.b16 %v264, %v261
    %v274 = vpack.c.b16 %v265, %v262
    %v275 = vpack.c.b16 %v269, %v266
    %v276 = vpack.c.b16 %v270, %v267
    %v277 = vpack.c.b16 %v271, %v268
    %v332 = vunpack.c.l.b16 %v204
    %v333 = vunpack.c.l.b16 %v205
    %v334 = vunpack.c.l.b16 %v206
    %v335 = vunpack.c.l.b16 %v207
    %v336 = vunpack.c.l.b16 %v208
    %v337 = vunpack.c.l.b16 %v209
    %v338 = vunpack.c.l.b16 %v210
    %v339 = vunpack.c.l.b16 %v211
    %v340 = vunpack.c.l.b16 %v212
    %v341 = vunpack.c.l.b16 %v213
    %v342 = vunpack.c.l.b16 %v214
    %v343 = vunpack.c.l.b16 %v215
    %v344 = vunpack.c.l.b16 %v216
    %v345 = vunpack.c.l.b16 %v217
    %v346 = vunpack.c.l.b16 %v218
    %v347 = vunpack.c.l.b16 %v219
    %v348 = vunpack.c.l.b16 %v220
    %v349 = vunpack.c.l.b16 %v221
    %v350 = vunpack.c.l.b16 %v222
    %v351 = vunpack.c.l.b16 %v223
    %v352 = vunpack.c.l.b16 %v224
    %v353 = vunpack.c.l.b16 %v225
    %v354 = vunpack.c.l.b16 %v226
    %v355 = vunpack.c.l.b16 %v227
    %v356 = vunpack.c.l.b16 %v228
    %v357 = vunpack.c.l.b16 %v229
    %v358 = vunpack.c.l.b16 %v230
    %v359 = vunpack.c.l.b16 %v231
    %v360 = vunpack.c.l.b16 %v232
    %v361 = vunpack.c.l.b16 %v233
    %v362 = vunpack.c.l.b16 %v234
    %v363 = vunpack.c.l.b16 %v235
    %v364 = vunpack.c.l.b16 %v236
    %v365 = vunpack.c.l.b16 %v237
    %v366 = vunpack.c.l.b16 %v238
    %v367 = vunpack.c.l.b16 %v239
    %v368 = vunpack.c.l.b16 %v240
    %v369 = vunpack.c.l.b16 %v241
    %v370 = vunpack.c.l.b16 %v242
    %v371 = vunpack.c.l.b16 %v243
    %v372 = vunpack.c.l.b16 %v244
    %v373 = vunpack.c.l.b16 %v245
    %v374 = vunpack.c.l.b16 %v246
    %v375 = vunpack.c.l.b16 %v247
    %v376 = vunpack.c.l.b16 %v248
    %v377 = vunpack.c.l.b16 %v249
    %v378 = vunpack.c.l.b16 %v250
    %v379 = vunpack.c.l.b16 %v251
    %v380 = vpack.c.b16 %v333, %v332
    %v381 = vpack.c.b16 %v335, %v334
    %v382 = vpack.c.b16 %v337, %v336
    %v383 = vpack.c.b16 %v339, %v338
    %v384 = vpack.c.b16 %v341, %v340
    %v385 = vpack.c.b16 %v343, %v342
    %v386 = vpack.c.b16 %v345, %v344
    %v387 = vpack.c.b16 %v347, %v346
    %v388 = vpack.c.b16 %v349, %v348
    %v389 = vpack.c.b16 %v351, %v350
    %v390 = vpack.c.b16 %v353, %v352
    %v391 = vpack.c.b16 %v355, %v354
    %v392 = vpack.c.b16 %v357, %v356
    %v393 = vpack.c.b16 %v359, %v358
    %v394 = vpack.c.b16 %v361, %v360
    %v395 = vpack.c.b16 %v363, %v362
    %v396 = vpack.c.b16 %v365, %v364
    %v397 = vpack.c.b16 %v367, %v366
    %v398 = vpack.c.b16 %v369, %v368
    %v399 = vpack.c.b16 %v371, %v370
    %v400 = vpack.c.b16 %v373, %v372
    %v401 = vpack.c.b16 %v375, %v374
    %v402 = vpack.c.b16 %v377, %v376
    %v403 = vpack.c.b16 %v379, %v378
    %428 = vmatprep.subr.bf16.mxu0 0
    %429 = vmatpush1.bf16.msra.mxu0 %v380
    %430 = vmatprep.subr.bf16.mxu0 0
    %431 = vmatpush1.bf16.msra.mxu0 %v381
    %432 = vmatprep.subr.bf16.mxu0 0
    %433 = vmatpush1.bf16.msra.mxu0 %v382
    %434 = vmatprep.subr.bf16.mxu0 0
    %435 = vmatpush1.bf16.msra.mxu0 %v383
    %436 = vmatprep.subr.bf16.mxu0 0
    %437 = vmatpush1.bf16.msra.mxu0 %v384
    %438 = vmatprep.subr.bf16.mxu0 0
    %439 = vmatpush1.bf16.msra.mxu0 %v385
    %440 = vmatprep.subr.bf16.mxu0 0
    %441 = vmatpush1.bf16.msra.mxu0 %v386
    %442 = vmatprep.subr.bf16.mxu0 0
    %443 = vmatpush1.bf16.msra.mxu0 %v387
    %444 = vmatprep.subr.bf16.mxu0 0
    %445 = vmatpush1.bf16.msra.mxu0 %v388
    %446 = vmatprep.subr.bf16.mxu0 0
    %447 = vmatpush1.bf16.msra.mxu0 %v389
    %448 = vmatprep.subr.bf16.mxu0 0
    %449 = vmatpush1.bf16.msra.mxu0 %v390
    %450 = vmatprep.subr.bf16.mxu0 0
    %451 = vmatpush1.bf16.msra.mxu0 %v391
    %452 = vmatprep.subr.bf16.mxu0 0
    %453 = vmatpush1.bf16.msra.mxu0 %v392
    %454 = vmatprep.subr.bf16.mxu0 0
    %455 = vmatpush1.bf16.msra.mxu0 %v393
    %456 = vmatprep.subr.bf16.mxu0 0
    %457 = vmatpush1.bf16.msra.mxu0 %v394
    %458 = vmatprep.subr.bf16.mxu0 0
    %459 = vmatpush1.bf16.msra.mxu0 %v395
    %460 = vmatprep.mubr.bf16.mxu0 %v273
    %461 = vmatmul.mubr.bf16.gmra.mrb[0].mxu0 %v272
    %v462 = vpop.f32.mrb[0].mxu0
    %v463 = vadd.f32 0.0, %v462
    %v464 = vpop.f32.mrb[0].mxu0
    %v465 = vpop.f32.mrb[0].mxu0
    %v466 = vadd.f32 0.0, %v465
    %v467 = vpop.f32.mrb[0].mxu0
    %468 = vmatprep.mubr.bf16.mxu0 %v276
    %469 = vmatmul.mubr.bf16.gmra.mrb[0].mxu0 %v275
    %v470 = vpop.f32.mrb[0].mxu0
    %v471 = vadd.f32 0.0, %v470
    %v472 = vpop.f32.mrb[0].mxu0
    %v473 = vpop.f32.mrb[0].mxu0
    %v474 = vadd.f32 0.0, %v473
    %v475 = vpop.f32.mrb[0].mxu0
    %476 = vdwg.mxu0
    %477 = vmatprep.subr.bf16.mxu0 0
    %478 = vmatpush1.bf16.msra.mxu0 %v396
    %479 = vmatprep.subr.bf16.mxu0 0
    %480 = vmatpush1.bf16.msra.mxu0 %v397
    %481 = vmatprep.subr.bf16.mxu0 0
    %482 = vmatpush1.bf16.msra.mxu0 %v398
    %483 = vmatprep.subr.bf16.mxu0 0
    %484 = vmatpush1.bf16.msra.mxu0 %v399
    %485 = vmatprep.subr.bf16.mxu0 0
    %486 = vmatpush1.bf16.msra.mxu0 %v400
    %487 = vmatprep.subr.bf16.mxu0 0
    %488 = vmatpush1.bf16.msra.mxu0 %v401
    %489 = vmatprep.subr.bf16.mxu0 0
    %490 = vmatpush1.bf16.msra.mxu0 %v402
    %491 = vmatprep.subr.bf16.mxu0 0
    %492 = vmatpush1.bf16.msra.mxu0 %v403
    %493 = vmatprep.subr.bf16.mxu0 0
    %494 = vmatpush1.bf16.msra.mxu0 0
    %495 = vmatprep.subr.bf16.mxu0 0
    %496 = vmatpush1.bf16.msra.mxu0 0
    %497 = vmatprep.subr.bf16.mxu0 0
    %498 = vmatpush1.bf16.msra.mxu0 0
    %499 = vmatprep.subr.bf16.mxu0 0
    %500 = vmatpush1.bf16.msra.mxu0 0
    %501 = vmatprep.subr.bf16.mxu0 0
    %502 = vmatpush1.bf16.msra.mxu0 0
    %503 = vmatprep.subr.bf16.mxu0 0
    %504 = vmatpush1.bf16.msra.mxu0 0
    %505 = vmatprep.subr.bf16.mxu0 0
    %506 = vmatpush1.bf16.msra.mxu0 0
    %507 = vmatprep.subr.bf16.mxu0 0
    %508 = vmatpush1.bf16.msra.mxu0 0
    %509 = vmatprep.mubr.bf16.mxu0 0
    %510 = vmatmul.mubr.bf16.gmra.mrb[0].mxu0 %v274
    %v511 = vpop.f32.mrb[0].mxu0
    %v512 = vadd.f32 %v463, %v511
    %v513 = vpop.f32.mrb[0].mxu0
    %v514 = vpop.f32.mrb[0].mxu0
    %v515 = vadd.f32 %v466, %v514
    %v516 = vpop.f32.mrb[0].mxu0
    %517 = vmatprep.mubr.bf16.mxu0 0
    %518 = vmatmul.mubr.bf16.gmra.mrb[0].mxu0 %v277
    %v519 = vpop.f32.mrb[0].mxu0
    %v520 = vadd.f32 %v471, %v519
    %v521 = vpop.f32.mrb[0].mxu0
    %v522 = vpop.f32.mrb[0].mxu0
    %v523 = vadd.f32 %v474, %v522
    %v524 = vpop.f32.mrb[0].mxu0
    %525 = vdwg.mxu0
    %v526 = vlaneseq
    %v527 = vshrl.u32 %v526, 7
    %v528 = vsub.s32 0, %v527
    %v529 = vrot.slane %v55, %v528
    %v530 = vmul.f32 %v529, %v512
    %v531 = vmul.f32 %v529, %v515
    %v532 = vmul.f32 %v529, %v520
    %v533 = vmul.f32 %v529, %v523
    %v534 = vlaneseq
    %v535 = vshrl.u32 %v534, 7
    %v536 = vsub.s32 0, %v535
    %v537 = vrot.slane %v56, %v536
    %v538 = vadd.f32 %v530, %v537
    %v539 = vadd.f32 %v531, %v537
    %v540 = vadd.f32 %v532, %v537
    %v541 = vadd.f32 %v533, %v537
    %v542 = vmax.f32 %v538, 0.0
    %v543 = vmax.f32 %v539, 0.0
    %v544 = vmax.f32 %v540, 0.0
    %v545 = vmax.f32 %v541, 0.0
    %v546 = vlaneseq
    %v547 = vshrl.u32 %v546, 7
    %v548 = vsub.s32 0, %v547
    %v549 = vrot.slane %v57, %v548
    %v550 = vmul.f32 %v549, %v512
    %v551 = vmul.f32 %v549, %v515
    %v552 = vmul.f32 %v549, %v520
    %v553 = vmul.f32 %v549, %v523
    %v554 = vlaneseq
    %v555 = vshrl.u32 %v554, 7
    %v556 = vsub.s32 0, %v555
    %v557 = vrot.slane %v58, %v556
    %v558 = vadd.f32 %v550, %v557
    %v559 = vadd.f32 %v551, %v557
    %v560 = vadd.f32 %v552, %v557
    %v561 = vadd.f32 %v553, %v557
    %v562 = vmax.f32 %v558, 0.0
    %v563 = vmax.f32 %v559, 0.0
    %v564 = vmax.f32 %v560, 0.0
    %v565 = vmax.f32 %v561, 0.0
    %v566 = vpack.c.bf16 %v542, %v542
    %v567 = vpack.c.bf16 %v543, %v543
    %v568 = vpack.c.bf16 %v544, %v544
    %v569 = vpack.c.bf16 %v545, %v545
    %v570 = vld [vmem:[#allocation2 + $0xc] sm:$0x1]
    %v571 = vsel %vm71, 0, %v570
    %572 = vst [vmem:[#allocation2 + $0xc] sm:$0x1] %v571
    %v573 = vld [vmem:[#allocation2 + $0x30] sm:$0x1]
    %v574 = vsel %vm71, 0, %v573
    %575 = vst [vmem:[#allocation2 + $0x30] sm:$0x1] %v574
    %v576 = vld [vmem:[#allocation2 + $0x54] sm:$0x1]
    %v577 = vsel %vm71, 0, %v576
    %578 = vst [vmem:[#allocation2 + $0x54] sm:$0x1] %v577
    %v579 = vld [vmem:[#allocation2 + $0x78] sm:$0x1]
    %v580 = vsel %vm71, 0, %v579
    %581 = vst [vmem:[#allocation2 + $0x78] sm:$0x1] %v580
    %v586 = vunpack.c.l.b16 %v566
    %v587 = vunpack.c.l.b16 %v567
    %v588 = vunpack.c.l.b16 %v568
    %v589 = vunpack.c.l.b16 %v569
    %v590 = vpack.c.b16 %v586, %v586
    %v591 = vpack.c.b16 %v587, %v587
    %v592 = vpack.c.b16 %v588, %v588
    %v593 = vpack.c.b16 %v589, %v589
    %v595 = vshrl.u32 %v590, 16
    %v597 = vrot.slane %v595, 7
    %v598 = vshll.u32 %v590, 16
    %v600 = vor.u32 %v597, %v598
    %v602 = vshrl.u32 %v591, 16
    %v604 = vrot.slane %v602, 7
    %v605 = vshll.u32 %v591, 16
    %v607 = vor.u32 %v604, %v605
    %v609 = vshrl.u32 %v592, 16
    %v611 = vrot.slane %v609, 7
    %v612 = vshll.u32 %v592, 16
    %v614 = vor.u32 %v611, %v612
    %v616 = vshrl.u32 %v593, 16
    %v618 = vrot.slane %v616, 7
    %v619 = vshll.u32 %v593, 16
    %v621 = vor.u32 %v618, %v619
    %v626 = vld [vmem:[#allocation2 + $0xc] sm:$0xf]
    %v627 = vsel %vm130, %v600, %v626
    %628 = vst [vmem:[#allocation2 + $0xc] sm:$0xf] %v627
    %v629 = vld [vmem:[#allocation2 + $0x30] sm:$0xf]
    %v630 = vsel %vm130, %v607, %v629
    %631 = vst [vmem:[#allocation2 + $0x30] sm:$0xf] %v630
    %v632 = vld [vmem:[#allocation2 + $0x54] sm:$0xf]
    %v633 = vsel %vm130, %v614, %v632
    %634 = vst [vmem:[#allocation2 + $0x54] sm:$0xf] %v633
    %v635 = vld [vmem:[#allocation2 + $0x78] sm:$0xf]
    %v636 = vsel %vm130, %v621, %v635
    %637 = vst [vmem:[#allocation2 + $0x78] sm:$0xf] %v636
    %638 = vst [vmem:[#allocation2 + $0x10] sm:$0xf] %v566
    %639 = vst [vmem:[#allocation2 + $0x34] sm:$0xf] %v567
    %640 = vst [vmem:[#allocation2 + $0x58] sm:$0xf] %v568
    %641 = vst [vmem:[#allocation2 + $0x7c] sm:$0xf] %v569
    %v642 = vrot.slane %v595, 4
    %v643 = vrot.slane %v598, 5
    %v644 = vor.u32 %v642, %v643
    %v645 = vrot.slane %v644, 4
    %v646 = vrot.slane %v602, 4
    %v647 = vrot.slane %v605, 5
    %v648 = vor.u32 %v646, %v647
    %v649 = vrot.slane %v648, 4
    %v650 = vrot.slane %v609, 4
    %v651 = vrot.slane %v612, 5
    %v652 = vor.u32 %v650, %v651
    %v653 = vrot.slane %v652, 4
    %v654 = vrot.slane %v616, 4
    %v655 = vrot.slane %v619, 5
    %v656 = vor.u32 %v654, %v655
    %v657 = vrot.slane %v656, 4
    %v662 = vld [vmem:[#allocation2 + $0x14] sm:$0xf]
    %v663 = vsel %vm168, %v645, %v662
    %664 = vst [vmem:[#allocation2 + $0x14] sm:$0xf] %v663
    %v665 = vld [vmem:[#allocation2 + $0x38] sm:$0xf]
    %v666 = vsel %vm168, %v649, %v665
    %667 = vst [vmem:[#allocation2 + $0x38] sm:$0xf] %v666
    %v668 = vld [vmem:[#allocation2 + $0x5c] sm:$0xf]
    %v669 = vsel %vm168, %v653, %v668
    %670 = vst [vmem:[#allocation2 + $0x5c] sm:$0xf] %v669
    %v671 = vld [vmem:[#allocation2 + $0x80] sm:$0xf]
    %v672 = vsel %vm168, %v657, %v671
    %673 = vst [vmem:[#allocation2 + $0x80] sm:$0xf] %v672
    %v674 = vld [vmem:[#allocation2 + $0x14] sm:$0x8]
    %v675 = vsel %vm183, 0, %v674
    %676 = vst [vmem:[#allocation2 + $0x14] sm:$0x8] %v675
    %v677 = vld [vmem:[#allocation2 + $0x38] sm:$0x8]
    %v678 = vsel %vm183, 0, %v677
    %679 = vst [vmem:[#allocation2 + $0x38] sm:$0x8] %v678
    %v680 = vld [vmem:[#allocation2 + $0x5c] sm:$0x8]
    %v681 = vsel %vm183, 0, %v680
    %682 = vst [vmem:[#allocation2 + $0x5c] sm:$0x8] %v681
    %v683 = vld [vmem:[#allocation2 + $0x80] sm:$0x8]
    %v684 = vsel %vm183, 0, %v683
    %685 = vst [vmem:[#allocation2 + $0x80] sm:$0x8] %v684
    %v686 = vpack.c.bf16 %v562, %v562
    %v687 = vpack.c.bf16 %v563, %v563
    %v688 = vpack.c.bf16 %v564, %v564
    %v689 = vpack.c.bf16 %v565, %v565
    %v690 = vld [vmem:[#allocation2 + $0x18] sm:$0x1]
    %v691 = vsel %vm71, 0, %v690
    %692 = vst [vmem:[#allocation2 + $0x18] sm:$0x1] %v691
    %v693 = vld [vmem:[#allocation2 + $0x3c] sm:$0x1]
    %v694 = vsel %vm71, 0, %v693
    %695 = vst [vmem:[#allocation2 + $0x3c] sm:$0x1] %v694
    %v696 = vld [vmem:[#allocation2 + $0x60] sm:$0x1]
    %v697 = vsel %vm71, 0, %v696
    %698 = vst [vmem:[#allocation2 + $0x60] sm:$0x1] %v697
    %v699 = vld [vmem:[#allocation2 + $0x84] sm:$0x1]
    %v700 = vsel %vm71, 0, %v699
    %701 = vst [vmem:[#allocation2 + $0x84] sm:$0x1] %v700
    %v706 = vunpack.c.l.b16 %v686
    %v707 = vunpack.c.l.b16 %v687
    %v708 = vunpack.c.l.b16 %v688
    %v709 = vunpack.c.l.b16 %v689
    %v710 = vpack.c.b16 %v706, %v706
    %v711 = vpack.c.b16 %v707, %v707
    %v712 = vpack.c.b16 %v708, %v708
    %v713 = vpack.c.b16 %v709, %v709
    %v715 = vshrl.u32 %v710, 16
    %v717 = vrot.slane %v715, 7
    %v718 = vshll.u32 %v710, 16
    %v720 = vor.u32 %v717, %v718
    %v722 = vshrl.u32 %v711, 16
    %v724 = vrot.slane %v722, 7
    %v725 = vshll.u32 %v711, 16
    %v727 = vor.u32 %v724, %v725
    %v729 = vshrl.u32 %v712, 16
    %v731 = vrot.slane %v729, 7
    %v732 = vshll.u32 %v712, 16
    %v734 = vor.u32 %v731, %v732
    %v736 = vshrl.u32 %v713, 16
    %v738 = vrot.slane %v736, 7
    %v739 = vshll.u32 %v713, 16
    %v741 = vor.u32 %v738, %v739
    %v746 = vld [vmem:[#allocation2 + $0x18] sm:$0xf]
    %v747 = vsel %vm130, %v720, %v746
    %748 = vst [vmem:[#allocation2 + $0x18] sm:$0xf] %v747
    %v749 = vld [vmem:[#allocation2 + $0x3c] sm:$0xf]
    %v750 = vsel %vm130, %v727, %v749
    %751 = vst [vmem:[#allocation2 + $0x3c] sm:$0xf] %v750
    %v752 = vld [vmem:[#allocation2 + $0x60] sm:$0xf]
    %v753 = vsel %vm130, %v734, %v752
    %754 = vst [vmem:[#allocation2 + $0x60] sm:$0xf] %v753
    %v755 = vld [vmem:[#allocation2 + $0x84] sm:$0xf]
    %v756 = vsel %vm130, %v741, %v755
    %757 = vst [vmem:[#allocation2 + $0x84] sm:$0xf] %v756
    %758 = vst [vmem:[#allocation2 + $0x1c] sm:$0xf] %v686
    %759 = vst [vmem:[#allocation2 + $0x40] sm:$0xf] %v687
    %760 = vst [vmem:[#allocation2 + $0x64] sm:$0xf] %v688
    %761 = vst [vmem:[#allocation2 + $0x88] sm:$0xf] %v689
    %v762 = vrot.slane %v715, 4
    %v763 = vrot.slane %v718, 5
    %v764 = vor.u32 %v762, %v763
    %v765 = vrot.slane %v764, 4
    %v766 = vrot.slane %v722, 4
    %v767 = vrot.slane %v725, 5
    %v768 = vor.u32 %v766, %v767
    %v769 = vrot.slane %v768, 4
    %v770 = vrot.slane %v729, 4
    %v771 = vrot.slane %v732, 5
    %v772 = vor.u32 %v770, %v771
    %v773 = vrot.slane %v772, 4
    %v774 = vrot.slane %v736, 4
    %v775 = vrot.slane %v739, 5
    %v776 = vor.u32 %v774, %v775
    %v777 = vrot.slane %v776, 4
    %v782 = vld [vmem:[#allocation2 + $0x20] sm:$0xf]
    %v783 = vsel %vm168, %v765, %v782
    %784 = vst [vmem:[#allocation2 + $0x20] sm:$0xf] %v783
    %v785 = vld [vmem:[#allocation2 + $0x44] sm:$0xf]
    %v786 = vsel %vm168, %v769, %v785
    %787 = vst [vmem:[#allocation2 + $0x44] sm:$0xf] %v786
    %v788 = vld [vmem:[#allocation2 + $0x68] sm:$0xf]
    %v789 = vsel %vm168, %v773, %v788
    %790 = vst [vmem:[#allocation2 + $0x68] sm:$0xf] %v789
    %v791 = vld [vmem:[#allocation2 + $0x8c] sm:$0xf]
    %v792 = vsel %vm168, %v777, %v791
    %793 = vst [vmem:[#allocation2 + $0x8c] sm:$0xf] %v792
    %v794 = vld [vmem:[#allocation2 + $0x20] sm:$0x8]
    %v795 = vsel %vm183, 0, %v794
    %796 = vst [vmem:[#allocation2 + $0x20] sm:$0x8] %v795
    %v797 = vld [vmem:[#allocation2 + $0x44] sm:$0x8]
    %v798 = vsel %vm183, 0, %v797
    %799 = vst [vmem:[#allocation2 + $0x44] sm:$0x8] %v798
    %v800 = vld [vmem:[#allocation2 + $0x68] sm:$0x8]
    %v801 = vsel %vm183, 0, %v800
    %802 = vst [vmem:[#allocation2 + $0x68] sm:$0x8] %v801
    %v803 = vld [vmem:[#allocation2 + $0x8c] sm:$0x8]
    %v804 = vsel %vm183, 0, %v803
    %805 = vst [vmem:[#allocation2 + $0x8c] sm:$0x8] %v804
    %v806 = vld [vmem:[#allocation2 + $0xc] sm:$0xff]
    %v807 = vld [vmem:[#allocation2 + $0x14] sm:$0xff]
    %v808 = vld [vmem:[#allocation2 + $0x1c] sm:$0xff]
    %v809 = vld [vmem:[#allocation2 + $0x30] sm:$0xff]
    %v810 = vld [vmem:[#allocation2 + $0x38] sm:$0xff]
    %v811 = vld [vmem:[#allocation2 + $0x40] sm:$0xff]
    %v812 = vld [vmem:[#allocation2 + $0x54] sm:$0xff]
    %v813 = vld [vmem:[#allocation2 + $0x5c] sm:$0xff]
    %v814 = vld [vmem:[#allocation2 + $0x64] sm:$0xff]
    %v815 = vld [vmem:[#allocation2 + $0x78] sm:$0xff]
    %v816 = vld [vmem:[#allocation2 + $0x80] sm:$0xff]
    %v817 = vld [vmem:[#allocation2 + $0x88] sm:$0xff]
    %v818 = vld [vmem:[#allocation6 + $0xc0] sm:$0xf]
    %v819 = vld [vmem:[#allocation6 + $0xc4] sm:$0xf]
    %v820 = vld [vmem:[#allocation6 + $0xc8] sm:$0xf]
    %v821 = vld [vmem:[#allocation6 + $0xcc] sm:$0xf]
    %v822 = vld [vmem:[#allocation6 + $0xd0] sm:$0xf]
    %v823 = vld [vmem:[#allocation6 + $0xd4] sm:$0xf]
    %v824 = vld [vmem:[#allocation6 + $0xd8] sm:$0xf]
    %v825 = vld [vmem:[#allocation6 + $0xdc] sm:$0xf]
    %v826 = vld [vmem:[#allocation6 + $0xe0] sm:$0xf]
    %v827 = vld [vmem:[#allocation6 + $0xe4] sm:$0xf]
    %v828 = vld [vmem:[#allocation6 + $0xe8] sm:$0xf]
    %v829 = vld [vmem:[#allocation6 + $0xec] sm:$0xf]
    %v830 = vld [vmem:[#allocation6 + $0xf0] sm:$0xf]
    %v831 = vld [vmem:[#allocation6 + $0xf4] sm:$0xf]
    %v832 = vld [vmem:[#allocation6 + $0xf8] sm:$0xf]
    %v833 = vld [vmem:[#allocation6 + $0xfc] sm:$0xf]
    %v834 = vld [vmem:[#allocation6 + $0x100] sm:$0xf]
    %v835 = vld [vmem:[#allocation6 + $0x104] sm:$0xf]
    %v836 = vld [vmem:[#allocation6 + $0x108] sm:$0xf]
    %v837 = vld [vmem:[#allocation6 + $0x10c] sm:$0xf]
    %v838 = vld [vmem:[#allocation6 + $0x110] sm:$0xf]
    %v839 = vld [vmem:[#allocation6 + $0x114] sm:$0xf]
    %v840 = vld [vmem:[#allocation6 + $0x118] sm:$0xf]
    %v841 = vld [vmem:[#allocation6 + $0x11c] sm:$0xf]
    %v842 = vld [vmem:[#allocation6 + $0x120] sm:$0xf]
    %v843 = vld [vmem:[#allocation6 + $0x124] sm:$0xf]
    %v844 = vld [vmem:[#allocation6 + $0x128] sm:$0xf]
    %v845 = vld [vmem:[#allocation6 + $0x12c] sm:$0xf]
    %v846 = vld [vmem:[#allocation6 + $0x130] sm:$0xf]
    %v847 = vld [vmem:[#allocation6 + $0x134] sm:$0xf]
    %v848 = vld [vmem:[#allocation6 + $0x138] sm:$0xf]
    %v849 = vld [vmem:[#allocation6 + $0x13c] sm:$0xf]
    %v850 = vld [vmem:[#allocation6 + $0x140] sm:$0xf]
    %v851 = vld [vmem:[#allocation6 + $0x144] sm:$0xf]
    %v852 = vld [vmem:[#allocation6 + $0x148] sm:$0xf]
    %v853 = vld [vmem:[#allocation6 + $0x14c] sm:$0xf]
    %v854 = vld [vmem:[#allocation6 + $0x150] sm:$0xf]
    %v855 = vld [vmem:[#allocation6 + $0x154] sm:$0xf]
    %v856 = vld [vmem:[#allocation6 + $0x158] sm:$0xf]
    %v857 = vld [vmem:[#allocation6 + $0x15c] sm:$0xf]
    %v858 = vld [vmem:[#allocation6 + $0x160] sm:$0xf]
    %v859 = vld [vmem:[#allocation6 + $0x164] sm:$0xf]
    %v860 = vld [vmem:[#allocation6 + $0x168] sm:$0xf]
    %v861 = vld [vmem:[#allocation6 + $0x16c] sm:$0xf]
    %v862 = vld [vmem:[#allocation6 + $0x170] sm:$0xf]
    %v863 = vld [vmem:[#allocation6 + $0x174] sm:$0xf]
    %v864 = vld [vmem:[#allocation6 + $0x178] sm:$0xf]
    %v865 = vld [vmem:[#allocation6 + $0x17c] sm:$0xf]
    %v866 = vld [vmem:[#allocation6 + $0x180] sm:$0xf]
    %v867 = vld [vmem:[#allocation6 + $0x184] sm:$0xf]
    %v868 = vld [vmem:[#allocation6 + $0x188] sm:$0xf]
    %v869 = vld [vmem:[#allocation6 + $0x18c] sm:$0xf]
    %v870 = vld [vmem:[#allocation6 + $0x190] sm:$0xf]
    %v871 = vld [vmem:[#allocation6 + $0x194] sm:$0xf]
    %v872 = vld [vmem:[#allocation6 + $0x198] sm:$0xf]
    %v873 = vld [vmem:[#allocation6 + $0x19c] sm:$0xf]
    %v874 = vld [vmem:[#allocation6 + $0x1a0] sm:$0xf]
    %v875 = vld [vmem:[#allocation6 + $0x1a4] sm:$0xf]
    %v876 = vld [vmem:[#allocation6 + $0x1a8] sm:$0xf]
    %v877 = vld [vmem:[#allocation6 + $0x1ac] sm:$0xf]
    %v878 = vld [vmem:[#allocation6 + $0x1b0] sm:$0xf]
    %v879 = vld [vmem:[#allocation6 + $0x1b4] sm:$0xf]
    %v880 = vld [vmem:[#allocation6 + $0x1b8] sm:$0xf]
    %v881 = vld [vmem:[#allocation6 + $0x1bc] sm:$0xf]
    %v882 = vld [vmem:[#allocation6 + $0x1c0] sm:$0xf]
    %v883 = vld [vmem:[#allocation6 + $0x1c4] sm:$0xf]
    %v884 = vld [vmem:[#allocation6 + $0x1c8] sm:$0xf]
    %v885 = vld [vmem:[#allocation6 + $0x1cc] sm:$0xf]
    %v886 = vld [vmem:[#allocation6 + $0x1d0] sm:$0xf]
    %v887 = vld [vmem:[#allocation6 + $0x1d4] sm:$0xf]
    %v888 = vld [vmem:[#allocation6 + $0x1d8] sm:$0xf]
    %v889 = vld [vmem:[#allocation6 + $0x1dc] sm:$0xf]
    %v890 = vld [vmem:[#allocation6 + $0x1e0] sm:$0xf]
    %v891 = vld [vmem:[#allocation6 + $0x1e4] sm:$0xf]
    %v892 = vld [vmem:[#allocation6 + $0x1e8] sm:$0xf]
    %v893 = vld [vmem:[#allocation6 + $0x1ec] sm:$0xf]
    %v894 = vld [vmem:[#allocation6 + $0x1f0] sm:$0xf]
    %v895 = vld [vmem:[#allocation6 + $0x1f4] sm:$0xf]
    %v896 = vld [vmem:[#allocation6 + $0x1f8] sm:$0xf]
    %v897 = vld [vmem:[#allocation6 + $0x1fc] sm:$0xf]
    %v898 = vld [vmem:[#allocation6 + $0x200] sm:$0xf]
    %v899 = vld [vmem:[#allocation6 + $0x204] sm:$0xf]
    %v900 = vld [vmem:[#allocation6 + $0x208] sm:$0xf]
    %v901 = vld [vmem:[#allocation6 + $0x20c] sm:$0xf]
    %v902 = vld [vmem:[#allocation6 + $0x210] sm:$0xf]
    %v903 = vld [vmem:[#allocation6 + $0x214] sm:$0xf]
    %v904 = vld [vmem:[#allocation6 + $0x218] sm:$0xf]
    %v905 = vld [vmem:[#allocation6 + $0x21c] sm:$0xf]
    %v906 = vld [vmem:[#allocation6 + $0x220] sm:$0xf]
    %v907 = vld [vmem:[#allocation6 + $0x224] sm:$0xf]
    %v908 = vld [vmem:[#allocation6 + $0x228] sm:$0xf]
    %v909 = vld [vmem:[#allocation6 + $0x22c] sm:$0xf]
    %v910 = vld [vmem:[#allocation6 + $0x230] sm:$0xf]
    %v911 = vld [vmem:[#allocation6 + $0x234] sm:$0xf]
    %v912 = vld [vmem:[#allocation6 + $0x238] sm:$0xf]
    %v913 = vld [vmem:[#allocation6 + $0x23c] sm:$0xf]
    %v926 = vunpack.c.l.b16 %v806
    %v927 = vunpack.c.h.b16 %v806
    %v928 = vunpack.c.l.b16 %v807
    %v929 = vunpack.c.h.b16 %v807
    %v930 = vunpack.c.l.b16 %v808
    %v931 = vunpack.c.h.b16 %v808
    %v932 = vunpack.c.l.b16 %v809
    %v933 = vunpack.c.h.b16 %v809
    %v934 = vunpack.c.l.b16 %v810
    %v935 = vunpack.c.h.b16 %v810
    %v936 = vunpack.c.l.b16 %v811
    %v937 = vunpack.c.h.b16 %v811
    %v938 = vunpack.c.l.b16 %v812
    %v939 = vunpack.c.h.b16 %v812
    %v940 = vunpack.c.l.b16 %v813
    %v941 = vunpack.c.h.b16 %v813
    %v942 = vunpack.c.l.b16 %v814
    %v943 = vunpack.c.h.b16 %v814
    %v944 = vunpack.c.l.b16 %v815
    %v945 = vunpack.c.h.b16 %v815
    %v946 = vunpack.c.l.b16 %v816
    %v947 = vunpack.c.h.b16 %v816
    %v948 = vunpack.c.l.b16 %v817
    %v949 = vunpack.c.h.b16 %v817
    %v950 = vpack.c.b16 %v932, %v926
    %v951 = vpack.c.b16 %v933, %v927
    %v952 = vpack.c.b16 %v934, %v928
    %v953 = vpack.c.b16 %v935, %v929
    %v954 = vpack.c.b16 %v936, %v930
    %v955 = vpack.c.b16 %v937, %v931
    %v956 = vpack.c.b16 %v944, %v938
    %v957 = vpack.c.b16 %v945, %v939
    %v958 = vpack.c.b16 %v946, %v940
    %v959 = vpack.c.b16 %v947, %v941
    %v960 = vpack.c.b16 %v948, %v942
    %v961 = vpack.c.b16 %v949, %v943
    %v1070 = vunpack.c.l.b16 %v818
    %v1071 = vunpack.c.l.b16 %v819
    %v1072 = vunpack.c.l.b16 %v820
    %v1073 = vunpack.c.l.b16 %v821
    %v1074 = vunpack.c.l.b16 %v822
    %v1075 = vunpack.c.l.b16 %v823
    %v1076 = vunpack.c.l.b16 %v824
    %v1077 = vunpack.c.l.b16 %v825
    %v1078 = vunpack.c.l.b16 %v826
    %v1079 = vunpack.c.l.b16 %v827
    %v1080 = vunpack.c.l.b16 %v828
    %v1081 = vunpack.c.l.b16 %v829
    %v1082 = vunpack.c.l.b16 %v830
    %v1083 = vunpack.c.l.b16 %v831
    %v1084 = vunpack.c.l.b16 %v832
    %v1085 = vunpack.c.l.b16 %v833
    %v1086 = vunpack.c.l.b16 %v834
    %v1087 = vunpack.c.l.b16 %v835
    %v1088 = vunpack.c.l.b16 %v836
    %v1089 = vunpack.c.l.b16 %v837
    %v1090 = vunpack.c.l.b16 %v838
    %v1091 = vunpack.c.l.b16 %v839
    %v1092 = vunpack.c.l.b16 %v840
    %v1093 = vunpack.c.l.b16 %v841
    %v1094 = vunpack.c.l.b16 %v842
    %v1095 = vunpack.c.l.b16 %v843
    %v1096 = vunpack.c.l.b16 %v844
    %v1097 = vunpack.c.l.b16 %v845
    %v1098 = vunpack.c.l.b16 %v846
    %v1099 = vunpack.c.l.b16 %v847
    %v1100 = vunpack.c.l.b16 %v848
    %v1101 = vunpack.c.l.b16 %v849
    %v1102 = vunpack.c.l.b16 %v850
    %v1103 = vunpack.c.l.b16 %v851
    %v1104 = vunpack.c.l.b16 %v852
    %v1105 = vunpack.c.l.b16 %v853
    %v1106 = vunpack.c.l.b16 %v854
    %v1107 = vunpack.c.l.b16 %v855
    %v1108 = vunpack.c.l.b16 %v856
    %v1109 = vunpack.c.l.b16 %v857
    %v1110 = vunpack.c.l.b16 %v858
    %v1111 = vunpack.c.l.b16 %v859
    %v1112 = vunpack.c.l.b16 %v860
    %v1113 = vunpack.c.l.b16 %v861
    %v1114 = vunpack.c.l.b16 %v862
    %v1115 = vunpack.c.l.b16 %v863
    %v1116 = vunpack.c.l.b16 %v864
    %v1117 = vunpack.c.l.b16 %v865
    %v1118 = vunpack.c.l.b16 %v866
    %v1119 = vunpack.c.l.b16 %v867
    %v1120 = vunpack.c.l.b16 %v868
    %v1121 = vunpack.c.l.b16 %v869
    %v1122 = vunpack.c.l.b16 %v870
    %v1123 = vunpack.c.l.b16 %v871
    %v1124 = vunpack.c.l.b16 %v872
    %v1125 = vunpack.c.l.b16 %v873
    %v1126 = vunpack.c.l.b16 %v874
    %v1127 = vunpack.c.l.b16 %v875
    %v1128 = vunpack.c.l.b16 %v876
    %v1129 = vunpack.c.l.b16 %v877
    %v1130 = vunpack.c.l.b16 %v878
    %v1131 = vunpack.c.l.b16 %v879
    %v1132 = vunpack.c.l.b16 %v880
    %v1133 = vunpack.c.l.b16 %v881
    %v1134 = vunpack.c.l.b16 %v882
    %v1135 = vunpack.c.l.b16 %v883
    %v1136 = vunpack.c.l.b16 %v884
    %v1137 = vunpack.c.l.b16 %v885
    %v1138 = vunpack.c.l.b16 %v886
    %v1139 = vunpack.c.l.b16 %v887
    %v1140 = vunpack.c.l.b16 %v888
    %v1141 = vunpack.c.l.b16 %v889
    %v1142 = vunpack.c.l.b16 %v890
    %v1143 = vunpack.c.l.b16 %v891
    %v1144 = vunpack.c.l.b16 %v892
    %v1145 = vunpack.c.l.b16 %v893
    %v1146 = vunpack.c.l.b16 %v894
    %v1147 = vunpack.c.l.b16 %v895
    %v1148 = vunpack.c.l.b16 %v896
    %v1149 = vunpack.c.l.b16 %v897
    %v1150 = vunpack.c.l.b16 %v898
    %v1151 = vunpack.c.l.b16 %v899
    %v1152 = vunpack.c.l.b16 %v900
    %v1153 = vunpack.c.l.b16 %v901
    %v1154 = vunpack.c.l.b16 %v902
    %v1155 = vunpack.c.l.b16 %v903
    %v1156 = vunpack.c.l.b16 %v904
    %v1157 = vunpack.c.l.b16 %v905
    %v1158 = vunpack.c.l.b16 %v906
    %v1159 = vunpack.c.l.b16 %v907
    %v1160 = vunpack.c.l.b16 %v908
    %v1161 = vunpack.c.l.b16 %v909
    %v1162 = vunpack.c.l.b16 %v910
    %v1163 = vunpack.c.l.b16 %v911
    %v1164 = vunpack.c.l.b16 %v912
    %v1165 = vunpack.c.l.b16 %v913
    %v1166 = vpack.c.b16 %v1071, %v1070
    %v1167 = vpack.c.b16 %v1073, %v1072
    %v1168 = vpack.c.b16 %v1075, %v1074
    %v1169 = vpack.c.b16 %v1077, %v1076
    %v1170 = vpack.c.b16 %v1079, %v1078
    %v1171 = vpack.c.b16 %v1081, %v1080
    %v1172 = vpack.c.b16 %v1083, %v1082
    %v1173 = vpack.c.b16 %v1085, %v1084
    %v1174 = vpack.c.b16 %v1087, %v1086
    %v1175 = vpack.c.b16 %v1089, %v1088
    %v1176 = vpack.c.b16 %v1091, %v1090
    %v1177 = vpack.c.b16 %v1093, %v1092
    %v1178 = vpack.c.b16 %v1095, %v1094
    %v1179 = vpack.c.b16 %v1097, %v1096
    %v1180 = vpack.c.b16 %v1099, %v1098
    %v1181 = vpack.c.b16 %v1101, %v1100
    %v1182 = vpack.c.b16 %v1103, %v1102
    %v1183 = vpack.c.b16 %v1105, %v1104
    %v1184 = vpack.c.b16 %v1107, %v1106
    %v1185 = vpack.c.b16 %v1109, %v1108
    %v1186 = vpack.c.b16 %v1111, %v1110
    %v1187 = vpack.c.b16 %v1113, %v1112
    %v1188 = vpack.c.b16 %v1115, %v1114
    %v1189 = vpack.c.b16 %v1117, %v1116
    %v1190 = vpack.c.b16 %v1119, %v1118
    %v1191 = vpack.c.b16 %v1121, %v1120
    %v1192 = vpack.c.b16 %v1123, %v1122
    %v1193 = vpack.c.b16 %v1125, %v1124
    %v1194 = vpack.c.b16 %v1127, %v1126
    %v1195 = vpack.c.b16 %v1129, %v1128
    %v1196 = vpack.c.b16 %v1131, %v1130
    %v1197 = vpack.c.b16 %v1133, %v1132
    %v1198 = vpack.c.b16 %v1135, %v1134
    %v1199 = vpack.c.b16 %v1137, %v1136
    %v1200 = vpack.c.b16 %v1139, %v1138
    %v1201 = vpack.c.b16 %v1141, %v1140
    %v1202 = vpack.c.b16 %v1143, %v1142
    %v1203 = vpack.c.b16 %v1145, %v1144
    %v1204 = vpack.c.b16 %v1147, %v1146
    %v1205 = vpack.c.b16 %v1149, %v1148
    %v1206 = vpack.c.b16 %v1151, %v1150
    %v1207 = vpack.c.b16 %v1153, %v1152
    %v1208 = vpack.c.b16 %v1155, %v1154
    %v1209 = vpack.c.b16 %v1157, %v1156
    %v1210 = vpack.c.b16 %v1159, %v1158
    %v1211 = vpack.c.b16 %v1161, %v1160
    %v1212 = vpack.c.b16 %v1163, %v1162
    %v1213 = vpack.c.b16 %v1165, %v1164
    %1262 = vmatprep.subr.bf16.mxu0 0
    %1263 = vmatpush1.bf16.msra.mxu0 %v1166
    %1264 = vmatprep.subr.bf16.mxu0 0
    %1265 = vmatpush1.bf16.msra.mxu0 %v1167
    %1266 = vmatprep.subr.bf16.mxu0 0
    %1267 = vmatpush1.bf16.msra.mxu0 %v1168
    %1268 = vmatprep.subr.bf16.mxu0 0
    %1269 = vmatpush1.bf16.msra.mxu0 %v1169
    %1270 = vmatprep.subr.bf16.mxu0 0
    %1271 = vmatpush1.bf16.msra.mxu0 %v1170
    %1272 = vmatprep.subr.bf16.mxu0 0
    %1273 = vmatpush1.bf16.msra.mxu0 %v1171
    %1274 = vmatprep.subr.bf16.mxu0 0
    %1275 = vmatpush1.bf16.msra.mxu0 %v1172
    %1276 = vmatprep.subr.bf16.mxu0 0
    %1277 = vmatpush1.bf16.msra.mxu0 %v1173
    %1278 = vmatprep.subr.bf16.mxu0 0
    %1279 = vmatpush1.bf16.msra.mxu0 %v1174
    %1280 = vmatprep.subr.bf16.mxu0 0
    %1281 = vmatpush1.bf16.msra.mxu0 %v1175
    %1282 = vmatprep.subr.bf16.mxu0 0
    %1283 = vmatpush1.bf16.msra.mxu0 %v1176
    %1284 = vmatprep.subr.bf16.mxu0 0
    %1285 = vmatpush1.bf16.msra.mxu0 %v1177
    %1286 = vmatprep.subr.bf16.mxu0 0
    %1287 = vmatpush1.bf16.msra.mxu0 %v1178
    %1288 = vmatprep.subr.bf16.mxu0 0
    %1289 = vmatpush1.bf16.msra.mxu0 %v1179
    %1290 = vmatprep.subr.bf16.mxu0 0
    %1291 = vmatpush1.bf16.msra.mxu0 %v1180
    %1292 = vmatprep.subr.bf16.mxu0 0
    %1293 = vmatpush1.bf16.msra.mxu0 %v1181
    %1294 = vmatprep.mubr.bf16.mxu0 %v951
    %1295 = vmatmul.mubr.bf16.gmra.mrb[0].mxu0 %v950
    %v1296 = vpop.f32.mrb[0].mxu0
    %v1297 = vadd.f32 0.0, %v1296
    %v1298 = vpop.f32.mrb[0].mxu0
    %v1299 = vpop.f32.mrb[0].mxu0
    %v1300 = vadd.f32 0.0, %v1299
    %v1301 = vpop.f32.mrb[0].mxu0
    %1302 = vmatprep.mubr.bf16.mxu0 %v957
    %1303 = vmatmul.mubr.bf16.gmra.mrb[0].mxu0 %v956
    %v1304 = vpop.f32.mrb[0].mxu0
    %v1305 = vadd.f32 0.0, %v1304
    %v1306 = vpop.f32.mrb[0].mxu0
    %v1307 = vpop.f32.mrb[0].mxu0
    %v1308 = vadd.f32 0.0, %v1307
    %v1309 = vpop.f32.mrb[0].mxu0
    %1310 = vdwg.mxu0
    %1311 = vmatprep.subr.bf16.mxu0 0
    %1312 = vmatpush1.bf16.msra.mxu0 %v1182
    %1313 = vmatprep.subr.bf16.mxu0 0
    %1314 = vmatpush1.bf16.msra.mxu0 %v1183
    %1315 = vmatprep.subr.bf16.mxu0 0
    %1316 = vmatpush1.bf16.msra.mxu0 %v1184
    %1317 = vmatprep.subr.bf16.mxu0 0
    %1318 = vmatpush1.bf16.msra.mxu0 %v1185
    %1319 = vmatprep.subr.bf16.mxu0 0
    %1320 = vmatpush1.bf16.msra.mxu0 %v1186
    %1321 = vmatprep.subr.bf16.mxu0 0
    %1322 = vmatpush1.bf16.msra.mxu0 %v1187
    %1323 = vmatprep.subr.bf16.mxu0 0
    %1324 = vmatpush1.bf16.msra.mxu0 %v1188
    %1325 = vmatprep.subr.bf16.mxu0 0
    %1326 = vmatpush1.bf16.msra.mxu0 %v1189
    %1327 = vmatprep.subr.bf16.mxu0 0
    %1328 = vmatpush1.bf16.msra.mxu0 %v1190
    %1329 = vmatprep.subr.bf16.mxu0 0
    %1330 = vmatpush1.bf16.msra.mxu0 %v1191
    %1331 = vmatprep.subr.bf16.mxu0 0
    %1332 = vmatpush1.bf16.msra.mxu0 %v1192
    %1333 = vmatprep.subr.bf16.mxu0 0
    %1334 = vmatpush1.bf16.msra.mxu0 %v1193
    %1335 = vmatprep.subr.bf16.mxu0 0
    %1336 = vmatpush1.bf16.msra.mxu0 %v1194
    %1337 = vmatprep.subr.bf16.mxu0 0
    %1338 = vmatpush1.bf16.msra.mxu0 %v1195
    %1339 = vmatprep.subr.bf16.mxu0 0
    %1340 = vmatpush1.bf16.msra.mxu0 %v1196
    %1341 = vmatprep.subr.bf16.mxu0 0
    %1342 = vmatpush1.bf16.msra.mxu0 %v1197
    %1343 = vmatprep.mubr.bf16.mxu0 %v953
    %1344 = vmatmul.mubr.bf16.gmra.mrb[0].mxu0 %v952
    %v1345 = vpop.f32.mrb[0].mxu0
    %v1346 = vadd.f32 %v1297, %v1345
    %v1347 = vpop.f32.mrb[0].mxu0
    %v1348 = vpop.f32.mrb[0].mxu0
    %v1349 = vadd.f32 %v1300, %v1348
    %v1350 = vpop.f32.mrb[0].mxu0
    %1351 = vmatprep.mubr.bf16.mxu0 %v959
    %1352 = vmatmul.mubr.bf16.gmra.mrb[0].mxu0 %v958
    %v1353 = vpop.f32.mrb[0].mxu0
    %v1354 = vadd.f32 %v1305, %v1353
    %v1355 = vpop.f32.mrb[0].mxu0
    %v1356 = vpop.f32.mrb[0].mxu0
    %v1357 = vadd.f32 %v1308, %v1356
    %v1358 = vpop.f32.mrb[0].mxu0
    %1359 = vdwg.mxu0
    %1360 = vmatprep.subr.bf16.mxu0 0
    %1361 = vmatpush1.bf16.msra.mxu0 %v1198
    %1362 = vmatprep.subr.bf16.mxu0 0
    %1363 = vmatpush1.bf16.msra.mxu0 %v1199
    %1364 = vmatprep.subr.bf16.mxu0 0
    %1365 = vmatpush1.bf16.msra.mxu0 %v1200
    %1366 = vmatprep.subr.bf16.mxu0 0
    %1367 = vmatpush1.bf16.msra.mxu0 %v1201
    %1368 = vmatprep.subr.bf16.mxu0 0
    %1369 = vmatpush1.bf16.msra.mxu0 %v1202
    %1370 = vmatprep.subr.bf16.mxu0 0
    %1371 = vmatpush1.bf16.msra.mxu0 %v1203
    %1372 = vmatprep.subr.bf16.mxu0 0
    %1373 = vmatpush1.bf16.msra.mxu0 %v1204
    %1374 = vmatprep.subr.bf16.mxu0 0
    %1375 = vmatpush1.bf16.msra.mxu0 %v1205
    %1376 = vmatprep.subr.bf16.mxu0 0
    %1377 = vmatpush1.bf16.msra.mxu0 %v1206
    %1378 = vmatprep.subr.bf16.mxu0 0
    %1379 = vmatpush1.bf16.msra.mxu0 %v1207
    %1380 = vmatprep.subr.bf16.mxu0 0
    %1381 = vmatpush1.bf16.msra.mxu0 %v1208
    %1382 = vmatprep.subr.bf16.mxu0 0
    %1383 = vmatpush1.bf16.msra.mxu0 %v1209
    %1384 = vmatprep.subr.bf16.mxu0 0
    %1385 = vmatpush1.bf16.msra.mxu0 %v1210
    %1386 = vmatprep.subr.bf16.mxu0 0
    %1387 = vmatpush1.bf16.msra.mxu0 %v1211
    %1388 = vmatprep.subr.bf16.mxu0 0
    %1389 = vmatpush1.bf16.msra.mxu0 %v1212
    %1390 = vmatprep.subr.bf16.mxu0 0
    %1391 = vmatpush1.bf16.msra.mxu0 %v1213
    %1392 = vmatprep.mubr.bf16.mxu0 %v955
    %1393 = vmatmul.mubr.bf16.gmra.mrb[0].mxu0 %v954
    %v1394 = vpop.f32.mrb[0].mxu0
    %v1395 = vadd.f32 %v1346, %v1394
    %v1396 = vpop.f32.mrb[0].mxu0
    %v1397 = vpop.f32.mrb[0].mxu0
    %v1398 = vadd.f32 %v1349, %v1397
    %v1399 = vpop.f32.mrb[0].mxu0
    %1400 = vmatprep.mubr.bf16.mxu0 %v961
    %1401 = vmatmul.mubr.bf16.gmra.mrb[0].mxu0 %v960
    %v1402 = vpop.f32.mrb[0].mxu0
    %v1403 = vadd.f32 %v1354, %v1402
    %v1404 = vpop.f32.mrb[0].mxu0
    %v1405 = vpop.f32.mrb[0].mxu0
    %v1406 = vadd.f32 %v1357, %v1405
    %v1407 = vpop.f32.mrb[0].mxu0
    %1408 = vdwg.mxu0
    %v1409 = vlaneseq
    %v1410 = vshrl.u32 %v1409, 7
    %v1411 = vsub.s32 0, %v1410
    %v1412 = vrot.slane %v59, %v1411
    %v1413 = vmul.f32 %v1412, %v1395
    %v1414 = vmul.f32 %v1412, %v1398
    %v1415 = vmul.f32 %v1412, %v1403
    %v1416 = vmul.f32 %v1412, %v1406
    %v1417 = vlaneseq
    %v1418 = vshrl.u32 %v1417, 7
    %v1419 = vsub.s32 0, %v1418
    %v1420 = vrot.slane %v60, %v1419
    %v1421 = vadd.f32 %v1413, %v1420
    %v1422 = vadd.f32 %v1414, %v1420
    %v1423 = vadd.f32 %v1415, %v1420
    %v1424 = vadd.f32 %v1416, %v1420
    %v1425 = vmax.f32 %v1421, 0.0
    %v1426 = vmax.f32 %v1422, 0.0
    %v1427 = vmax.f32 %v1423, 0.0
    %v1428 = vmax.f32 %v1424, 0.0
    %v1429 = vadd.f32 %v1425, %v61
    %v1430 = vadd.f32 %v1426, %v62
    %v1431 = vadd.f32 %v1427, %v63
    %v1432 = vadd.f32 %v1428, %v64
    %v1433 = vmax.f32 %v1429, 0.0
    %v1434 = vmax.f32 %v1430, 0.0
    %v1435 = vmax.f32 %v1431, 0.0
    %v1436 = vmax.f32 %v1432, 0.0
    %1437 = vst [vmem:[#allocation9] sm:$0xff] %v1433
    %1438 = vst [vmem:[#allocation9 + $0x8] sm:$0xff] %v1434
    %1439 = vst [vmem:[#allocation9 + $0x10] sm:$0xff] %v1435
    %1440 = vst [vmem:[#allocation9 + $0x18] sm:$0xff] %v1436
    // Predicated region
    $region26: #{tpu_custom_call.1} parent=1 // pred_check
      _
    $region27: #{tpu_custom_call.1} parent=1 // pred_check_branch
      %1442 = sbr.rel (0) target = $region29
    $region28: #{tpu_custom_call.1} parent=1 // pred_region
      %s1444 = ssub.s32 512, 512
      %1445 = vsyncadd [#allocation5], %s1444
      %s1446 = sshll.u32 [#allocation9], 4
      %s1447 = int_to_ptr.vmem [resolvable:$true] %s1446
      %1452 = dma.vmem_to_hbm [thread:$0]  %s1447, 512, %s3, [#allocation5], 128, 128, 8
    $region29: #{tpu_custom_call.1} parent=1 // pred_fallthru
      _
    // Predicated region
    $region30: #{tpu_custom_call.1} parent=1 // pred_check
      _
    $region31: #{tpu_custom_call.1} parent=1 // pred_check_branch
      %1454 = sbr.rel (0) target = $region33
    $region32: #{tpu_custom_call.1} parent=1 // pred_region
      %1455 = dma.done [#allocation5], 512
    $region33: #{tpu_custom_call.1} parent=1 // pred_fallthru
      _
    %1456 = vsyncpa [#allocation4], 1
    %1457 = vsyncpa [#allocation7], 1
    %1458 = vsyncpa [#allocation5], 1

</llo_original>
